<compile_context>
chip_gen: v7x
topology: tpu7x:2x2x1
jax: 0.10.0
libtpu: 0.0.40
codegen_flags: <defaults>
</compile_context>

<pallas_src>
import numpy as np
import jax
import jax.numpy as jnp
from jax.experimental import pallas as pl
from jax.experimental.pallas import tpu as pltpu


# ----------------------- deterministic parameter setup -----------------------

def _round_up(x, m):
    return ((x + m - 1) // m) * m


def _hann_window(win_length):
    n = np.arange(win_length)
    return 0.5 - 0.5 * np.cos(2.0 * np.pi * n / win_length)   # periodic Hann


def _melscale_fbanks_htk(n_freqs, f_min, f_max, n_mels, sample_rate):
    """torchaudio.functional.melscale_fbanks, mel_scale='htk', norm=None."""
    all_freqs = np.linspace(0.0, sample_rate // 2, n_freqs)

    def hz_to_mel(f):
        return 2595.0 * np.log10(1.0 + f / 700.0)

    def mel_to_hz(m):
        return 700.0 * (10.0 ** (m / 2595.0) - 1.0)

    m_pts = np.linspace(hz_to_mel(f_min), hz_to_mel(f_max), n_mels + 2)
    f_pts = mel_to_hz(m_pts)
    f_diff = f_pts[1:] - f_pts[:-1]
    slopes = f_pts[None, :] - all_freqs[:, None]        # (n_freqs, n_mels + 2)
    down = -slopes[:, :-2] / f_diff[:-1]
    up = slopes[:, 2:] / f_diff[1:]
    fb = np.maximum(0.0, np.minimum(down, up))
    return fb.astype(np.float32)                        # (n_freqs, n_mels)


def _create_dct(n_mfcc, n_mels):
    """torchaudio.functional.create_dct(n_mfcc, n_mels, norm='ortho')."""
    n = np.arange(n_mels)
    k = np.arange(n_mfcc)[:, None]
    dct = np.cos(np.pi / n_mels * (n + 0.5) * k)        # (n_mfcc, n_mels)
    dct[0] *= 1.0 / np.sqrt(2.0)
    dct *= np.sqrt(2.0 / n_mels)
    return dct.T.astype(np.float32)                     # (n_mels, n_mfcc)


# --------------------------------- Pallas kernel ------------------------------

def _make_mfcc_kernel(n_freq_pad, n_frames, clips_per_block, n_mel_pad, top_db):
    T = n_frames
    C = clips_per_block
    M = T * C

    def kernel(chunks_ref, dft_top_ref, dft_bot_ref, fb_ref, dct_ref, out_ref):
        # chunks: (T+1, C, hop) f32, chunk-major so frame rows are (t, clip)
        # dft_top/bot: (hop, 2*n_freq_pad) bf16 ; fb: (n_freq_pad, n_mel_pad) bf16
        # dct: (n_mel_pad, n_out_pad) bf16 ; out: (M, n_out_pad) f32, M = T*C
        chunks = chunks_ref[...]
        hop = chunks.shape[-1]

        # In-kernel framing: frame t of clip c = [chunk_t | chunk_{t+1}].
        # Both reshapes are trivial shape casts (C is a multiple of 8).
        first = chunks[:-1].reshape(M, hop).astype(jnp.bfloat16)   # (M, hop)
        second = chunks[1:].reshape(M, hop).astype(jnp.bfloat16)   # (M, hop)

        # Fused lane-aligned [cos | sin] DFT as two K=128 bf16 matmuls (f32 acc).
        spec = (jnp.dot(first, dft_top_ref[...],
                        preferred_element_type=jnp.float32)
                + jnp.dot(second, dft_bot_ref[...],
                          preferred_element_type=jnp.float32))     # (M, 2*Fp)
        re = spec[:, :n_freq_pad]
        im = spec[:, n_freq_pad:]
        power = (re * re + im * im).astype(jnp.bfloat16)           # (M, Fp)

        # Mel projection (padded freq rows of fb are zero).
        mel = jnp.dot(power, fb_ref[...], preferred_element_type=jnp.float32)

        # AmplitudeToDB('power', top_db): ref=1.0 -> db_multiplier = 0.
        db = 10.0 * jnp.log10(jnp.maximum(mel, 1e-10))             # (M, Mp) f32

        # Per-clip top_db clamp (matches torchaudio AmplitudeToDB on one clip).
        # Rows are (t, clip); trivial reshape, then linear reductions.
        db3 = db.reshape(T, C, n_mel_pad)
        clip_max = jnp.max(jnp.max(db3, axis=2, keepdims=True),
                           axis=0, keepdims=True)                  # (1, C, 1)
        clamped = jnp.maximum(db3, clip_max - top_db).reshape(M, n_mel_pad)

        # DCT-II (ortho); columns >= n_mfcc are zero -> lane-dense 128-wide store.
        out_ref[...] = jnp.dot(clamped.astype(jnp.bfloat16), dct_ref[...],
                               preferred_element_type=jnp.float32)

    return kernel


# --------------------------------- wrapper ------------------------------------

class AudioPreprocessorPallas:
    def __init__(self, sample_rate=2048, duration=1, n_fft=256, win_length=256,
                 hop_length=128, n_mels=32, n_mfcc=16, average_by=None,
                 clips_per_block=64, dtype=jnp.float32):
        assert win_length == n_fft, "win_length < n_fft padding not supported"
        assert n_fft == 2 * hop_length, "framing fast-path assumes hop == n_fft//2"
        assert hop_length % 128 == 0, "hop must be lane-aligned (multiple of 128)"
        assert clips_per_block % 8 == 0, "clip axis must stay sublane-aligned"
        self.sample_rate = sample_rate
        self.length = duration * sample_rate
        assert self.length % hop_length == 0
        self.n_fft = n_fft
        self.hop_length = hop_length
        self.n_freq = n_fft // 2 + 1
        self.n_mels = n_mels
        self.n_mfcc = n_mfcc
        self.average_by = average_by
        self.clips_per_block = clips_per_block
        self._dtype = dtype
        self.top_db = 80.0

        # n_frames with center=True: 1 + length // hop_length
        self.n_frames = 1 + self.length // hop_length

        # lane-aligned padded dims
        self.n_freq_pad = _round_up(self.n_freq, 128)    # 129 -> 256
        self.n_mel_pad = _round_up(n_mels, 128)          # 32  -> 128
        self.n_out_pad = _round_up(n_mfcc, 128)          # 16  -> 128

        # --- constants -------------------------------------------------------
        window = _hann_window(win_length)
        n = np.arange(n_fft)[:, None]
        k = np.arange(self.n_freq)[None, :]
        ang = 2.0 * np.pi * n * k / n_fft
        cos_mat = np.cos(ang) * window[:, None]
        sin_mat = -np.sin(ang) * window[:, None]
        dft = np.zeros((n_fft, 2 * self.n_freq_pad), np.float32)
        dft[:, : self.n_freq] = cos_mat
        dft[:, self.n_freq_pad: self.n_freq_pad + self.n_freq] = sin_mat
        # split at hop so frames never have to be materialized as 256-wide rows
        self.dft_top = jnp.asarray(dft[: hop_length]).astype(jnp.bfloat16)
        self.dft_bot = jnp.asarray(dft[hop_length:]).astype(jnp.bfloat16)

        fb = _melscale_fbanks_htk(self.n_freq, 0.0, float(sample_rate // 2),
                                  n_mels, sample_rate)
        fb_pad = np.zeros((self.n_freq_pad, self.n_mel_pad), np.float32)
        fb_pad[: self.n_freq, : n_mels] = fb             # padded freq rows = 0
        self.mel_fb = jnp.asarray(fb_pad).astype(jnp.bfloat16)

        dct = _create_dct(n_mfcc, n_mels)                # (n_mels, n_mfcc)
        dct_pad = np.zeros((self.n_mel_pad, self.n_out_pad), np.float32)
        dct_pad[: n_mels, : n_mfcc] = dct                # padded mel rows = 0
        self.dct_mat = jnp.asarray(dct_pad).astype(jnp.bfloat16)

        self._kernel_cache = {}

    # -- pallas_call factory (block size / grid depend on batch size) ----------
    def _get_kernel(self, c_eff, num_blocks):
        key = (c_eff, num_blocks)
        if key in self._kernel_cache:
            return self._kernel_cache[key]
        T = self.n_frames
        m_blk = c_eff * T
        kern = _make_mfcc_kernel(self.n_freq_pad, T, c_eff,
                                 self.n_mel_pad, self.top_db)
        grid_spec = pl.GridSpec(
            grid=(num_blocks,),
            in_specs=[
                pl.BlockSpec((T + 1, c_eff, self.hop_length),
                             lambda i: (0, i, 0)),
                pl.BlockSpec((self.hop_length, 2 * self.n_freq_pad),
                             lambda i: (0, 0)),
                pl.BlockSpec((self.hop_length, 2 * self.n_freq_pad),
                             lambda i: (0, 0)),
                pl.BlockSpec((self.n_freq_pad, self.n_mel_pad),
                             lambda i: (0, 0)),
                pl.BlockSpec((self.n_mel_pad, self.n_out_pad),
                             lambda i: (0, 0)),
            ],
            out_specs=pl.BlockSpec((m_blk, self.n_out_pad), lambda i: (i, 0)),
        )
        f = pl.pallas_call(
            kern,
            out_shape=jax.ShapeDtypeStruct((num_blocks * m_blk, self.n_out_pad),
                                           jnp.float32),
            grid_spec=grid_spec,
            compiler_params=pltpu.CompilerParams(
                dimension_semantics=("parallel",),       # shard blocks across TCs
                vmem_limit_bytes=32 * 1024 * 1024),      # v5e default is only 16MiB
        )
        self._kernel_cache[key] = f
        return f

    # -- glue (SafeLoader fix_length + reflect pad, framing stays in-kernel) ---
    def _fix_length(self, w):
        n = w.shape[1]
        if n >= self.length:
            return w[:, : self.length]
        return jnp.pad(w, ((0, 0), (0, self.length - n)))

    def _chunk(self, w):
        # center=True reflect pad, then hop-sized chunks, chunk-major layout so
        # all in-kernel frame reshapes are trivial (clip axis stays sublane dim).
        pad = self.n_fft // 2
        padded = jnp.pad(w, ((0, 0), (pad, pad)), mode="reflect")
        pb = w.shape[0]
        chunks = padded.reshape(pb, self.n_frames + 1, self.hop_length)
        return jnp.transpose(chunks, (1, 0, 2))          # (T+1, pb, hop) f32

    def __call__(self, waveform):
        w = jnp.asarray(waveform, jnp.float32)
        single = w.ndim == 1
        if single:
            w = w[None, :]
        assert w.ndim == 2
        batch = w.shape[0]
        w = self._fix_length(w)

        # effective clips per block: full size for big batches, shrunk (but still
        # sublane-aligned) for small ones so we don't burn MXU rows on dummies.
        c_eff = min(self.clips_per_block, _round_up(batch, 8))
        padded_b = _round_up(batch, c_eff)
        num_blocks = padded_b // c_eff
        if num_blocks > 1 and num_blocks % 2 == 1:       # even grid for dual-TC
            num_blocks += 1
            padded_b = num_blocks * c_eff
        if padded_b != batch:
            w = jnp.pad(w, ((0, padded_b - batch), (0, 0)))

        chunks = self._chunk(w)                          # (T+1, padded_b, hop)

        out = self._get_kernel(c_eff, num_blocks)(
            chunks, self.dft_top, self.dft_bot, self.mel_fb, self.dct_mat)

        # kernel rows are ordered (block, frame, clip); undo cheaply in wrapper
        out = out.reshape(num_blocks, self.n_frames, c_eff, self.n_out_pad)
        out = out[..., : self.n_mfcc]                    # drop zero MFCC lanes
        out = jnp.transpose(out, (0, 2, 1, 3)).reshape(
            padded_b, self.n_frames, self.n_mfcc)
        out = out[:batch]                                # (B, time, n_mfcc)

        if self.average_by is not None:
            axis = {"mfcc": 0, "time": 1}[self.average_by] + 1
            out = jnp.mean(out, axis=axis)
        return out.astype(self._dtype)


# ----------------------------------- main --------------------------------------

if __name__ == "__main__":
    key = jax.random.PRNGKey(0)
    # small, module-consistent config: sr=2048 Hz, 1 s clip, 256-pt FFT,
    # hop 128, 32 mel bins, 16 MFCCs -> per clip output (time=17, n_mfcc=16)
    pre = AudioPreprocessorPallas(sample_rate=2048, duration=1, n_fft=256,
                                  win_length=256, hop_length=128,
                                  n_mels=32, n_mfcc=16, average_by=None,
                                  clips_per_block=64)

    # batched path: 16 clips, clips shorter than 1 s exercise zero padding.
    batch_wave = jax.random.normal(key, (16, 1800), dtype=jnp.float32)
    out = jax.block_until_ready(pre(batch_wave))
    assert out.shape == (16, pre.n_frames, pre.n_mfcc), out.shape
    assert out.dtype == jnp.float32
    assert bool(jnp.all(jnp.isfinite(out)))

    # single-clip path (original module semantics): (1, time, n_mfcc);
    # longer than 1 s exercises truncation and the batch-padding path.
    single_wave = jax.random.normal(jax.random.PRNGKey(1), (2300,),
                                    dtype=jnp.float32)
    out1 = jax.block_until_ready(pre(single_wave))
    assert out1.shape == (1, pre.n_frames, pre.n_mfcc), out1.shape
    assert bool(jnp.all(jnp.isfinite(out1)))

    # throughput configuration: 128 clips -> 2 blocks of 64 (M=1088 rows each),
    # even grid for dual-TensorCore chips.
    big_wave = jax.random.normal(jax.random.PRNGKey(2), (128, 2048),
                                 dtype=jnp.float32)
    out2 = jax.block_until_ready(pre(big_wave))
    assert out2.shape == (128, pre.n_frames, pre.n_mfcc), out2.shape
    assert bool(jnp.all(jnp.isfinite(out2)))

    # per-clip independence / consistency check: clip 0 processed alone must
    # match clip 0 processed inside the batch (top_db clamp is per-clip).
    out_single0 = jax.block_until_ready(pre(batch_wave[0]))
    assert bool(jnp.allclose(out_single0[0], out[0], atol=0.5)), "mismatch"

    print("KERNEL_OK")
</pallas_src>

<mosaic_0001>
module attributes {stable_mosaic.version = 11 : i64} {
  func.func @kernel(%arg0: i32, %arg1: memref<18x16x128xf32, #tpu.memory_space<vmem>>, %arg2: memref<128x512xbf16, #tpu.memory_space<vmem>>, %arg3: memref<128x512xbf16, #tpu.memory_space<vmem>>, %arg4: memref<256x128xbf16, #tpu.memory_space<vmem>>, %arg5: memref<128x128xbf16, #tpu.memory_space<vmem>>, %arg6: memref<272x128xf32, #tpu.memory_space<vmem>>) attributes {dimension_semantics = [#tpu.dimension_semantics<parallel>], iteration_bounds = array<i64: 1>, scalar_prefetch = 0 : i64, scratch_operands = 0 : i64, tpu.core_type = #tpu.core_type<tc>, window_params = [{transform_indices = @transform_0, window_bounds = array<i64: 18, 16, 128>}, {pipeline_mode = #tpu.pipeline_mode<synchronous>, transform_indices = @transform_1, window_bounds = array<i64: 128, 512>}, {pipeline_mode = #tpu.pipeline_mode<synchronous>, transform_indices = @transform_2, window_bounds = array<i64: 128, 512>}, {pipeline_mode = #tpu.pipeline_mode<synchronous>, transform_indices = @transform_3, window_bounds = array<i64: 256, 128>}, {pipeline_mode = #tpu.pipeline_mode<synchronous>, transform_indices = @transform_4, window_bounds = array<i64: 128, 128>}, {transform_indices = @transform_5, window_bounds = array<i64: 272, 128>}]} {
    %c0 = arith.constant 0 : index
    %c0_0 = arith.constant 0 : index
    %c0_1 = arith.constant 0 : index
    %0 = vector.load %arg1[%c0, %c0_0, %c0_1] : memref<18x16x128xf32, #tpu.memory_space<vmem>>, vector<18x16x128xf32>
    %1 = vector.extract_strided_slice %0 {offsets = [0, 0, 0], sizes = [17, 16, 128], strides = [1, 1, 1]} : vector<18x16x128xf32> to vector<17x16x128xf32>
    %2 = vector.shape_cast %1 : vector<17x16x128xf32> to vector<272x128xf32>
    %3 = arith.truncf %2 : vector<272x128xf32> to vector<272x128xbf16>
    %4 = vector.extract_strided_slice %0 {offsets = [1, 0, 0], sizes = [17, 16, 128], strides = [1, 1, 1]} : vector<18x16x128xf32> to vector<17x16x128xf32>
    %5 = vector.shape_cast %4 : vector<17x16x128xf32> to vector<272x128xf32>
    %6 = arith.truncf %5 : vector<272x128xf32> to vector<272x128xbf16>
    %c0_2 = arith.constant 0 : index
    %c0_3 = arith.constant 0 : index
    %7 = vector.load %arg2[%c0_2, %c0_3] : memref<128x512xbf16, #tpu.memory_space<vmem>>, vector<128x512xbf16>
    %cst = arith.constant dense<0.000000e+00> : vector<272x512xf32>
    %8 = tpu.matmul %3, %7, %cst {dimension_numbers = #tpu.dot_dimension_numbers<[1], [0], [0], [1], [0, 0, 1, 1], [], []>} : vector<272x128xbf16>, vector<128x512xbf16>, vector<272x512xf32> -> vector<272x512xf32>
    %c0_4 = arith.constant 0 : index
    %c0_5 = arith.constant 0 : index
    %9 = vector.load %arg3[%c0_4, %c0_5] : memref<128x512xbf16, #tpu.memory_space<vmem>>, vector<128x512xbf16>
    %cst_6 = arith.constant dense<0.000000e+00> : vector<272x512xf32>
    %10 = tpu.matmul %6, %9, %cst_6 {dimension_numbers = #tpu.dot_dimension_numbers<[1], [0], [0], [1], [0, 0, 1, 1], [], []>} : vector<272x128xbf16>, vector<128x512xbf16>, vector<272x512xf32> -> vector<272x512xf32>
    %11 = arith.addf %8, %10 : vector<272x512xf32>
    %12 = vector.extract_strided_slice %11 {offsets = [0, 0], sizes = [272, 256], strides = [1, 1]} : vector<272x512xf32> to vector<272x256xf32>
    %13 = vector.extract_strided_slice %11 {offsets = [0, 256], sizes = [272, 256], strides = [1, 1]} : vector<272x512xf32> to vector<272x256xf32>
    %14 = arith.mulf %12, %12 : vector<272x256xf32>
    %15 = arith.mulf %13, %13 : vector<272x256xf32>
    %16 = arith.addf %14, %15 : vector<272x256xf32>
    %17 = arith.truncf %16 : vector<272x256xf32> to vector<272x256xbf16>
    %c0_7 = arith.constant 0 : index
    %c0_8 = arith.constant 0 : index
    %18 = vector.load %arg4[%c0_7, %c0_8] : memref<256x128xbf16, #tpu.memory_space<vmem>>, vector<256x128xbf16>
    %cst_9 = arith.constant dense<0.000000e+00> : vector<272x128xf32>
    %19 = tpu.matmul %17, %18, %cst_9 {dimension_numbers = #tpu.dot_dimension_numbers<[1], [0], [0], [1], [0, 0, 1, 1], [], []>} : vector<272x256xbf16>, vector<256x128xbf16>, vector<272x128xf32> -> vector<272x128xf32>
    %cst_10 = arith.constant 1.000000e-10 : f32
    %20 = vector.broadcast %cst_10 : f32 to vector<272x128xf32>
    %21 = arith.maximumf %19, %20 : vector<272x128xf32>
    %22 = math.log %21 : vector<272x128xf32>
    %cst_11 = arith.constant 0.434294492 : f32
    %23 = vector.broadcast %cst_11 : f32 to vector<272x128xf32>
    %24 = arith.mulf %22, %23 : vector<272x128xf32>
    %cst_12 = arith.constant 1.000000e+01 : f32
    %25 = vector.broadcast %cst_12 : f32 to vector<272x128xf32>
    %26 = arith.mulf %25, %24 : vector<272x128xf32>
    %27 = vector.shape_cast %26 : vector<272x128xf32> to vector<17x16x128xf32>
    %cst_13 = arith.constant dense<0xFF800000> : vector<17x16xf32>
    %28 = vector.multi_reduction <maximumf>, %27, %cst_13 [2] : vector<17x16x128xf32> to vector<17x16xf32>
    %29 = vector.shape_cast %28 : vector<17x16xf32> to vector<17x16x1xf32>
    %cst_14 = arith.constant dense<0xFF800000> : vector<16x1xf32>
    %30 = vector.multi_reduction <maximumf>, %29, %cst_14 [0] : vector<17x16x1xf32> to vector<16x1xf32>
    %31 = vector.shape_cast %30 : vector<16x1xf32> to vector<1x16x1xf32>
    %cst_15 = arith.constant 8.000000e+01 : f32
    %32 = vector.broadcast %cst_15 : f32 to vector<1x16x1xf32>
    %33 = arith.subf %31, %32 : vector<1x16x1xf32>
    %34 = vector.broadcast %33 : vector<1x16x1xf32> to vector<17x16x128xf32>
    %35 = arith.maximumf %27, %34 : vector<17x16x128xf32>
    %36 = vector.shape_cast %35 : vector<17x16x128xf32> to vector<272x128xf32>
    %37 = arith.truncf %36 : vector<272x128xf32> to vector<272x128xbf16>
    %c0_16 = arith.constant 0 : index
    %c0_17 = arith.constant 0 : index
    %38 = vector.load %arg5[%c0_16, %c0_17] : memref<128x128xbf16, #tpu.memory_space<vmem>>, vector<128x128xbf16>
    %cst_18 = arith.constant dense<0.000000e+00> : vector<272x128xf32>
    %39 = tpu.matmul %37, %38, %cst_18 {dimension_numbers = #tpu.dot_dimension_numbers<[1], [0], [0], [1], [0, 0, 1, 1], [], []>} : vector<272x128xbf16>, vector<128x128xbf16>, vector<272x128xf32> -> vector<272x128xf32>
    %c0_19 = arith.constant 0 : index
    %c0_20 = arith.constant 0 : index
    %40 = vector.load %arg6[%c0_19, %c0_20] : memref<272x128xf32, #tpu.memory_space<vmem>>, vector<272x128xf32>
    tpu.vector_store %arg6[%c0_19, %c0_20], %39 {strides = array<i32>} : memref<272x128xf32, #tpu.memory_space<vmem>>, vector<272x128xf32>,
    return
  }
  func.func @transform_0(%arg0: i32) -> (i32, i32, i32) {
    %c0_i32 = arith.constant 0 : i32
    %c0_i32_0 = arith.constant 0 : i32
    %c0_i32_1 = arith.constant 0 : i32
    return %c0_i32, %arg0, %c0_i32_0 : i32, i32, i32
  }
  func.func @transform_1(%arg0: i32) -> (i32, i32) {
    %c0_i32 = arith.constant 0 : i32
    %c0_i32_0 = arith.constant 0 : i32
    %c0_i32_1 = arith.constant 0 : i32
    return %c0_i32, %c0_i32_0 : i32, i32
  }
  func.func @transform_2(%arg0: i32) -> (i32, i32) {
    %c0_i32 = arith.constant 0 : i32
    %c0_i32_0 = arith.constant 0 : i32
    %c0_i32_1 = arith.constant 0 : i32
    return %c0_i32, %c0_i32_0 : i32, i32
  }
  func.func @transform_3(%arg0: i32) -> (i32, i32) {
    %c0_i32 = arith.constant 0 : i32
    %c0_i32_0 = arith.constant 0 : i32
    %c0_i32_1 = arith.constant 0 : i32
    return %c0_i32, %c0_i32_0 : i32, i32
  }
  func.func @transform_4(%arg0: i32) -> (i32, i32) {
    %c0_i32 = arith.constant 0 : i32
    %c0_i32_0 = arith.constant 0 : i32
    %c0_i32_1 = arith.constant 0 : i32
    return %c0_i32, %c0_i32_0 : i32, i32
  }
  func.func @transform_5(%arg0: i32) -> (i32, i32) {
    %c0_i32 = arith.constant 0 : i32
    %c0_i32_0 = arith.constant 0 : i32
    return %arg0, %c0_i32 : i32, i32
  }
}

</mosaic_0001>

<llo_original>
// kernel: tpu_custom_call.1
$region0: #{tpu_custom_call.1}
  #allocation0 [shape = 'u32[]', space=smem, size = 0x4, offset = 0x4, fixed_abs, tag = 'smem constant byte address 0x4 - core index']
  #allocation1 [shape = 'u32[144,128]{1,0:T(1,128)}', space=vmem, size = 0x12000, scoped, tag = 'internal scratch']
  %s0 = inlined_call_operand.hbm [shape: f32[18,16,128], index: 0, kind: input, shape index: {}]
  %s1 = inlined_call_operand.hbm [shape: bf16[128,512], index: 1, kind: input, shape index: {}]
  %s2 = inlined_call_operand.hbm [shape: bf16[128,512], index: 2, kind: input, shape index: {}]
  %s3 = inlined_call_operand.hbm [shape: bf16[256,128], index: 3, kind: input, shape index: {}]
  %s4 = inlined_call_operand.hbm [shape: bf16[128,128], index: 4, kind: input, shape index: {}]
  %s5 = inlined_call_operand.hbm [shape: f32[272,128], index: 5, kind: output, shape index: {}]
  %s6 = sld [smem:[#allocation0]]
  $region50: #{tpu_custom_call.1} parent=0
    _
  %s8 = ssub.s32 1, %s6
  %s9 = scalar_select 0, %s8, %s6
  $region1: #{tpu_custom_call.1} parent=0
    #allocation2 [shape = 'u8[147456]{0}', space=vmem, size = 0x24000, scoped, tag = 'input window, operand 0, single buffered']
    #allocation3 [shape = 's32[1]{0}', space=sflag, size = 0x4, scoped, tag = 'scoped memory for tpu_custom_call.1']
    #allocation4 [shape = 's32[1]{0}', space=sflag, size = 0x4, scoped, tag = 'scoped memory for tpu_custom_call.1']
    #allocation5 [shape = 'u8[131072]{0}', space=vmem, size = 0x20000, scoped, tag = 'input window, operand 1, single buffered']
    #allocation6 [shape = 's32[1]{0}', space=sflag, size = 0x4, scoped, tag = 'scoped memory for tpu_custom_call.1']
    #allocation7 [shape = 'u8[131072]{0}', space=vmem, size = 0x20000, scoped, tag = 'input window, operand 2, single buffered']
    #allocation8 [shape = 'u8[65536]{0}', space=vmem, size = 0x10000, scoped, tag = 'input window, operand 3, single buffered']
    #allocation9 [shape = 's32[1]{0}', space=sflag, size = 0x4, scoped, tag = 'scoped memory for tpu_custom_call.1']
    #allocation10 [shape = 'u8[32768]{0}', space=vmem, size = 0x8000, scoped, tag = 'input window, operand 4, single buffered']
    #allocation11 [shape = 'u8[139264]{0}', space=vmem, size = 0x22000, scoped, tag = 'output window, operand 0, single buffered']
    %10 = vsyncpa [#allocation3], 0
    %11 = vsyncpa [#allocation6], 0
    %12 = vsyncpa [#allocation9], 0
    %13 = vsyncpa [#allocation4], 0
    // Predicated region
    $region2: #{tpu_custom_call.1} parent=1 // pred_check
      _
    $region3: #{tpu_custom_call.1} parent=1 // pred_check_branch
      %15 = sbr.rel (0) target = $region5
    $region4: #{tpu_custom_call.1} parent=1 // pred_region
      %s17 = ssub.s32 4608, 4608
      %18 = vsyncadd [#allocation3], %s17
      %s19 = sshll.u32 [#allocation2], 4
      %s20 = int_to_ptr.vmem [resolvable:$true] %s19
      %25 = dma.hbm_to_vmem [thread:$0]  %s0, 4608, %s20, [#allocation3], 128, 128, 8
    $region5: #{tpu_custom_call.1} parent=1 // pred_fallthru
      _
    // Predicated region
    $region6: #{tpu_custom_call.1} parent=1 // pred_check
      _
    $region7: #{tpu_custom_call.1} parent=1 // pred_check_branch
      %27 = sbr.rel (0) target = $region9
    $region8: #{tpu_custom_call.1} parent=1 // pred_region
      %s29 = ssub.s32 4096, 4096
      %30 = vsyncadd [#allocation6], %s29
      %s31 = sshll.u32 [#allocation5], 4
      %s32 = int_to_ptr.vmem [resolvable:$true] %s31
      %37 = dma.hbm_to_vmem [thread:$0]  %s1, 4096, %s32, [#allocation6], 256, 256, 16
    $region9: #{tpu_custom_call.1} parent=1 // pred_fallthru
      _
    // Predicated region
    $region10: #{tpu_custom_call.1} parent=1 // pred_check
      _
    $region11: #{tpu_custom_call.1} parent=1 // pred_check_branch
      %39 = sbr.rel (0) target = $region13
    $region12: #{tpu_custom_call.1} parent=1 // pred_region
      %s41 = ssub.s32 4096, 4096
      %42 = vsyncadd [#allocation6], %s41
      %s43 = sshll.u32 [#allocation7], 4
      %s44 = int_to_ptr.vmem [resolvable:$true] %s43
      %49 = dma.hbm_to_vmem [thread:$0]  %s2, 4096, %s44, [#allocation6], 256, 256, 16
    $region13: #{tpu_custom_call.1} parent=1 // pred_fallthru
      _
    // Predicated region
    $region14: #{tpu_custom_call.1} parent=1 // pred_check
      _
    $region15: #{tpu_custom_call.1} parent=1 // pred_check_branch
      %51 = sbr.rel (0) target = $region17
    $region16: #{tpu_custom_call.1} parent=1 // pred_region
      %s53 = ssub.s32 2048, 2048
      %54 = vsyncadd [#allocation9], %s53
      %s55 = sshll.u32 [#allocation8], 4
      %s56 = int_to_ptr.vmem [resolvable:$true] %s55
      %61 = dma.hbm_to_vmem [thread:$0]  %s3, 2048, %s56, [#allocation9], 64, 64, 4
    $region17: #{tpu_custom_call.1} parent=1 // pred_fallthru
      _
    // Predicated region
    $region18: #{tpu_custom_call.1} parent=1 // pred_check
      _
    $region19: #{tpu_custom_call.1} parent=1 // pred_check_branch
      %63 = sbr.rel (0) target = $region21
    $region20: #{tpu_custom_call.1} parent=1 // pred_region
      %s65 = ssub.s32 1024, 1024
      %66 = vsyncadd [#allocation9], %s65
      %s67 = sshll.u32 [#allocation10], 4
      %s68 = int_to_ptr.vmem [resolvable:$true] %s67
      %73 = dma.hbm_to_vmem [thread:$0]  %s4, 1024, %s68, [#allocation9], 64, 64, 4
    $region21: #{tpu_custom_call.1} parent=1 // pred_fallthru
      _
    // Predicated region
    $region22: #{tpu_custom_call.1} parent=1 // pred_check
      _
    $region23: #{tpu_custom_call.1} parent=1 // pred_check_branch
      %75 = sbr.rel (0) target = $region25
    $region24: #{tpu_custom_call.1} parent=1 // pred_region
      %76 = dma.done [#allocation3], 4608
    $region25: #{tpu_custom_call.1} parent=1 // pred_fallthru
      _
    // Predicated region
    $region26: #{tpu_custom_call.1} parent=1 // pred_check
      _
    $region27: #{tpu_custom_call.1} parent=1 // pred_check_branch
      %78 = sbr.rel (0) target = $region29
    $region28: #{tpu_custom_call.1} parent=1 // pred_region
      %79 = dma.done [#allocation6], 4096
    $region29: #{tpu_custom_call.1} parent=1 // pred_fallthru
      _
    // Predicated region
    $region30: #{tpu_custom_call.1} parent=1 // pred_check
      _
    $region31: #{tpu_custom_call.1} parent=1 // pred_check_branch
      %81 = sbr.rel (0) target = $region33
    $region32: #{tpu_custom_call.1} parent=1 // pred_region
      %82 = dma.done [#allocation6], 4096
    $region33: #{tpu_custom_call.1} parent=1 // pred_fallthru
      _
    // Predicated region
    $region34: #{tpu_custom_call.1} parent=1 // pred_check
      _
    $region35: #{tpu_custom_call.1} parent=1 // pred_check_branch
      %84 = sbr.rel (0) target = $region37
    $region36: #{tpu_custom_call.1} parent=1 // pred_region
      %85 = dma.done [#allocation9], 2048
    $region37: #{tpu_custom_call.1} parent=1 // pred_fallthru
      _
    // Predicated region
    $region38: #{tpu_custom_call.1} parent=1 // pred_check
      _
    $region39: #{tpu_custom_call.1} parent=1 // pred_check_branch
      %87 = sbr.rel (0) target = $region41
    $region40: #{tpu_custom_call.1} parent=1 // pred_region
      %88 = dma.done [#allocation9], 1024
    $region41: #{tpu_custom_call.1} parent=1 // pred_fallthru
      _
    %v90 = vld [vmem:[#allocation2] sm:$0xff]
    %v91 = vld [vmem:[#allocation2 + $0x8] sm:$0xff]
    %v92 = vld [vmem:[#allocation2 + $0x10] sm:$0xff]
    %v93 = vld [vmem:[#allocation2 + $0x18] sm:$0xff]
    %v94 = vld [vmem:[#allocation2 + $0x20] sm:$0xff]
    %v95 = vld [vmem:[#allocation2 + $0x28] sm:$0xff]
    %v96 = vld [vmem:[#allocation2 + $0x30] sm:$0xff]
    %v97 = vld [vmem:[#allocation2 + $0x38] sm:$0xff]
    %v98 = vld [vmem:[#allocation2 + $0x40] sm:$0xff]
    %v99 = vld [vmem:[#allocation2 + $0x48] sm:$0xff]
    %v100 = vld [vmem:[#allocation2 + $0x50] sm:$0xff]
    %v101 = vld [vmem:[#allocation2 + $0x58] sm:$0xff]
    %v102 = vld [vmem:[#allocation2 + $0x60] sm:$0xff]
    %v103 = vld [vmem:[#allocation2 + $0x68] sm:$0xff]
    %v104 = vld [vmem:[#allocation2 + $0x70] sm:$0xff]
    %v105 = vld [vmem:[#allocation2 + $0x78] sm:$0xff]
    %v106 = vld [vmem:[#allocation2 + $0x80] sm:$0xff]
    %v107 = vld [vmem:[#allocation2 + $0x88] sm:$0xff]
    %v108 = vld [vmem:[#allocation2 + $0x90] sm:$0xff]
    %v109 = vld [vmem:[#allocation2 + $0x98] sm:$0xff]
    %v110 = vld [vmem:[#allocation2 + $0xa0] sm:$0xff]
    %v111 = vld [vmem:[#allocation2 + $0xa8] sm:$0xff]
    %v112 = vld [vmem:[#allocation2 + $0xb0] sm:$0xff]
    %v113 = vld [vmem:[#allocation2 + $0xb8] sm:$0xff]
    %v114 = vld [vmem:[#allocation2 + $0xc0] sm:$0xff]
    %v115 = vld [vmem:[#allocation2 + $0xc8] sm:$0xff]
    %v116 = vld [vmem:[#allocation2 + $0xd0] sm:$0xff]
    %v117 = vld [vmem:[#allocation2 + $0xd8] sm:$0xff]
    %v118 = vld [vmem:[#allocation2 + $0xe0] sm:$0xff]
    %v119 = vld [vmem:[#allocation2 + $0xe8] sm:$0xff]
    %v120 = vld [vmem:[#allocation2 + $0xf0] sm:$0xff]
    %v121 = vld [vmem:[#allocation2 + $0xf8] sm:$0xff]
    %v122 = vld [vmem:[#allocation2 + $0x100] sm:$0xff]
    %v123 = vld [vmem:[#allocation2 + $0x108] sm:$0xff]
    %v124 = vld [vmem:[#allocation2 + $0x110] sm:$0xff]
    %v125 = vld [vmem:[#allocation2 + $0x118] sm:$0xff]
    %v126 = vpack.c.bf16 %v91, %v90
    %v127 = vpack.c.bf16 %v93, %v92
    %v128 = vpack.c.bf16 %v95, %v94
    %v129 = vpack.c.bf16 %v97, %v96
    %v130 = vpack.c.bf16 %v99, %v98
    %v131 = vpack.c.bf16 %v101, %v100
    %v132 = vpack.c.bf16 %v103, %v102
    %v133 = vpack.c.bf16 %v105, %v104
    %v134 = vpack.c.bf16 %v107, %v106
    %v135 = vpack.c.bf16 %v109, %v108
    %v136 = vpack.c.bf16 %v111, %v110
    %v137 = vpack.c.bf16 %v113, %v112
    %v138 = vpack.c.bf16 %v115, %v114
    %v139 = vpack.c.bf16 %v117, %v116
    %v140 = vpack.c.bf16 %v119, %v118
    %v141 = vpack.c.bf16 %v121, %v120
    %v142 = vpack.c.bf16 %v123, %v122
    %v143 = vpack.c.bf16 %v125, %v124
    %v144 = vld [vmem:[#allocation5] sm:$0xff]
    %v145 = vld [vmem:[#allocation5 + $0x8] sm:$0xff]
    %v146 = vld [vmem:[#allocation5 + $0x10] sm:$0xff]
    %v147 = vld [vmem:[#allocation5 + $0x18] sm:$0xff]
    %v148 = vld [vmem:[#allocation5 + $0x20] sm:$0xff]
    %v149 = vld [vmem:[#allocation5 + $0x28] sm:$0xff]
    %v150 = vld [vmem:[#allocation5 + $0x30] sm:$0xff]
    %v151 = vld [vmem:[#allocation5 + $0x38] sm:$0xff]
    %v152 = vld [vmem:[#allocation5 + $0x40] sm:$0xff]
    %v153 = vld [vmem:[#allocation5 + $0x48] sm:$0xff]
    %v154 = vld [vmem:[#allocation5 + $0x50] sm:$0xff]
    %v155 = vld [vmem:[#allocation5 + $0x58] sm:$0xff]
    %v156 = vld [vmem:[#allocation5 + $0x60] sm:$0xff]
    %v157 = vld [vmem:[#allocation5 + $0x68] sm:$0xff]
    %v158 = vld [vmem:[#allocation5 + $0x70] sm:$0xff]
    %v159 = vld [vmem:[#allocation5 + $0x78] sm:$0xff]
    %v160 = vld [vmem:[#allocation5 + $0x80] sm:$0xff]
    %v161 = vld [vmem:[#allocation5 + $0x88] sm:$0xff]
    %v162 = vld [vmem:[#allocation5 + $0x90] sm:$0xff]
    %v163 = vld [vmem:[#allocation5 + $0x98] sm:$0xff]
    %v164 = vld [vmem:[#allocation5 + $0xa0] sm:$0xff]
    %v165 = vld [vmem:[#allocation5 + $0xa8] sm:$0xff]
    %v166 = vld [vmem:[#allocation5 + $0xb0] sm:$0xff]
    %v167 = vld [vmem:[#allocation5 + $0xb8] sm:$0xff]
    %v168 = vld [vmem:[#allocation5 + $0xc0] sm:$0xff]
    %v169 = vld [vmem:[#allocation5 + $0xc8] sm:$0xff]
    %v170 = vld [vmem:[#allocation5 + $0xd0] sm:$0xff]
    %v171 = vld [vmem:[#allocation5 + $0xd8] sm:$0xff]
    %v172 = vld [vmem:[#allocation5 + $0xe0] sm:$0xff]
    %v173 = vld [vmem:[#allocation5 + $0xe8] sm:$0xff]
    %v174 = vld [vmem:[#allocation5 + $0xf0] sm:$0xff]
    %v175 = vld [vmem:[#allocation5 + $0xf8] sm:$0xff]
    %v176 = vld [vmem:[#allocation7] sm:$0xff]
    %v177 = vld [vmem:[#allocation7 + $0x8] sm:$0xff]
    %v178 = vld [vmem:[#allocation7 + $0x10] sm:$0xff]
    %v179 = vld [vmem:[#allocation7 + $0x18] sm:$0xff]
    %v180 = vld [vmem:[#allocation7 + $0x20] sm:$0xff]
    %v181 = vld [vmem:[#allocation7 + $0x28] sm:$0xff]
    %v182 = vld [vmem:[#allocation7 + $0x30] sm:$0xff]
    %v183 = vld [vmem:[#allocation7 + $0x38] sm:$0xff]
    %v184 = vld [vmem:[#allocation7 + $0x40] sm:$0xff]
    %v185 = vld [vmem:[#allocation7 + $0x48] sm:$0xff]
    %v186 = vld [vmem:[#allocation7 + $0x50] sm:$0xff]
    %v187 = vld [vmem:[#allocation7 + $0x58] sm:$0xff]
    %v188 = vld [vmem:[#allocation7 + $0x60] sm:$0xff]
    %v189 = vld [vmem:[#allocation7 + $0x68] sm:$0xff]
    %v190 = vld [vmem:[#allocation7 + $0x70] sm:$0xff]
    %v191 = vld [vmem:[#allocation7 + $0x78] sm:$0xff]
    %v192 = vld [vmem:[#allocation7 + $0x80] sm:$0xff]
    %v193 = vld [vmem:[#allocation7 + $0x88] sm:$0xff]
    %v194 = vld [vmem:[#allocation7 + $0x90] sm:$0xff]
    %v195 = vld [vmem:[#allocation7 + $0x98] sm:$0xff]
    %v196 = vld [vmem:[#allocation7 + $0xa0] sm:$0xff]
    %v197 = vld [vmem:[#allocation7 + $0xa8] sm:$0xff]
    %v198 = vld [vmem:[#allocation7 + $0xb0] sm:$0xff]
    %v199 = vld [vmem:[#allocation7 + $0xb8] sm:$0xff]
    %v200 = vld [vmem:[#allocation7 + $0xc0] sm:$0xff]
    %v201 = vld [vmem:[#allocation7 + $0xc8] sm:$0xff]
    %v202 = vld [vmem:[#allocation7 + $0xd0] sm:$0xff]
    %v203 = vld [vmem:[#allocation7 + $0xd8] sm:$0xff]
    %v204 = vld [vmem:[#allocation7 + $0xe0] sm:$0xff]
    %v205 = vld [vmem:[#allocation7 + $0xe8] sm:$0xff]
    %v206 = vld [vmem:[#allocation7 + $0xf0] sm:$0xff]
    %v207 = vld [vmem:[#allocation7 + $0xf8] sm:$0xff]
    %v240 = vunpack.c.l.b16 %v176
    %v241 = vunpack.c.h.b16 %v176
    %v242 = vunpack.c.l.b16 %v177
    %v243 = vunpack.c.h.b16 %v177
    %v244 = vunpack.c.l.b16 %v178
    %v245 = vunpack.c.h.b16 %v178
    %v246 = vunpack.c.l.b16 %v179
    %v247 = vunpack.c.h.b16 %v179
    %v248 = vunpack.c.l.b16 %v180
    %v249 = vunpack.c.h.b16 %v180
    %v250 = vunpack.c.l.b16 %v181
    %v251 = vunpack.c.h.b16 %v181
    %v252 = vunpack.c.l.b16 %v182
    %v253 = vunpack.c.h.b16 %v182
    %v254 = vunpack.c.l.b16 %v183
    %v255 = vunpack.c.h.b16 %v183
    %v256 = vunpack.c.l.b16 %v184
    %v257 = vunpack.c.h.b16 %v184
    %v258 = vunpack.c.l.b16 %v185
    %v259 = vunpack.c.h.b16 %v185
    %v260 = vunpack.c.l.b16 %v186
    %v261 = vunpack.c.h.b16 %v186
    %v262 = vunpack.c.l.b16 %v187
    %v263 = vunpack.c.h.b16 %v187
    %v264 = vunpack.c.l.b16 %v188
    %v265 = vunpack.c.h.b16 %v188
    %v266 = vunpack.c.l.b16 %v189
    %v267 = vunpack.c.h.b16 %v189
    %v268 = vunpack.c.l.b16 %v190
    %v269 = vunpack.c.h.b16 %v190
    %v270 = vunpack.c.l.b16 %v191
    %v271 = vunpack.c.h.b16 %v191
    %v272 = vunpack.c.l.b16 %v192
    %v273 = vunpack.c.h.b16 %v192
    %v274 = vunpack.c.l.b16 %v193
    %v275 = vunpack.c.h.b16 %v193
    %v276 = vunpack.c.l.b16 %v194
    %v277 = vunpack.c.h.b16 %v194
    %v278 = vunpack.c.l.b16 %v195
    %v279 = vunpack.c.h.b16 %v195
    %v280 = vunpack.c.l.b16 %v196
    %v281 = vunpack.c.h.b16 %v196
    %v282 = vunpack.c.l.b16 %v197
    %v283 = vunpack.c.h.b16 %v197
    %v284 = vunpack.c.l.b16 %v198
    %v285 = vunpack.c.h.b16 %v198
    %v286 = vunpack.c.l.b16 %v199
    %v287 = vunpack.c.h.b16 %v199
    %v288 = vunpack.c.l.b16 %v200
    %v289 = vunpack.c.h.b16 %v200
    %v290 = vunpack.c.l.b16 %v201
    %v291 = vunpack.c.h.b16 %v201
    %v292 = vunpack.c.l.b16 %v202
    %v293 = vunpack.c.h.b16 %v202
    %v294 = vunpack.c.l.b16 %v203
    %v295 = vunpack.c.h.b16 %v203
    %v296 = vunpack.c.l.b16 %v204
    %v297 = vunpack.c.h.b16 %v204
    %v298 = vunpack.c.l.b16 %v205
    %v299 = vunpack.c.h.b16 %v205
    %v300 = vunpack.c.l.b16 %v206
    %v301 = vunpack.c.h.b16 %v206
    %v302 = vunpack.c.l.b16 %v207
    %v303 = vunpack.c.h.b16 %v207
    %v304 = vpack.c.b16 %v244, %v240
    %v305 = vpack.c.b16 %v245, %v241
    %v306 = vpack.c.b16 %v246, %v242
    %v307 = vpack.c.b16 %v247, %v243
    %v308 = vpack.c.b16 %v252, %v248
    %v309 = vpack.c.b16 %v253, %v249
    %v310 = vpack.c.b16 %v254, %v250
    %v311 = vpack.c.b16 %v255, %v251
    %v312 = vpack.c.b16 %v260, %v256
    %v313 = vpack.c.b16 %v261, %v257
    %v314 = vpack.c.b16 %v262, %v258
    %v315 = vpack.c.b16 %v263, %v259
    %v316 = vpack.c.b16 %v268, %v264
    %v317 = vpack.c.b16 %v269, %v265
    %v318 = vpack.c.b16 %v270, %v266
    %v319 = vpack.c.b16 %v271, %v267
    %v320 = vpack.c.b16 %v276, %v272
    %v321 = vpack.c.b16 %v277, %v273
    %v322 = vpack.c.b16 %v278, %v274
    %v323 = vpack.c.b16 %v279, %v275
    %v324 = vpack.c.b16 %v284, %v280
    %v325 = vpack.c.b16 %v285, %v281
    %v326 = vpack.c.b16 %v286, %v282
    %v327 = vpack.c.b16 %v287, %v283
    %v328 = vpack.c.b16 %v292, %v288
    %v329 = vpack.c.b16 %v293, %v289
    %v330 = vpack.c.b16 %v294, %v290
    %v331 = vpack.c.b16 %v295, %v291
    %v332 = vpack.c.b16 %v300, %v296
    %v333 = vpack.c.b16 %v301, %v297
    %v334 = vpack.c.b16 %v302, %v298
    %v335 = vpack.c.b16 %v303, %v299
    %368 = vmatprep.subr.bf16.mxu0 %v305
    %369 = vmatpush1.bf16.msra.mxu0 %v304
    %370 = vmatprep.subr.bf16.mxu0 %v309
    %371 = vmatpush1.bf16.msra.mxu0 %v308
    %372 = vmatprep.subr.bf16.mxu0 %v313
    %373 = vmatpush1.bf16.msra.mxu0 %v312
    %374 = vmatprep.subr.bf16.mxu0 %v317
    %375 = vmatpush1.bf16.msra.mxu0 %v316
    %376 = vmatprep.subr.bf16.mxu0 %v321
    %377 = vmatpush1.bf16.msra.mxu0 %v320
    %378 = vmatprep.subr.bf16.mxu0 %v325
    %379 = vmatpush1.bf16.msra.mxu0 %v324
    %380 = vmatprep.subr.bf16.mxu0 %v329
    %381 = vmatpush1.bf16.msra.mxu0 %v328
    %382 = vmatprep.subr.bf16.mxu0 %v333
    %383 = vmatpush1.bf16.msra.mxu0 %v332
    %384 = vmatprep.subr.bf16.mxu0 0
    %385 = vmatpush1.bf16.msra.mxu0 0
    %386 = vmatprep.subr.bf16.mxu0 0
    %387 = vmatpush1.bf16.msra.mxu0 0
    %388 = vmatprep.subr.bf16.mxu0 0
    %389 = vmatpush1.bf16.msra.mxu0 0
    %390 = vmatprep.subr.bf16.mxu0 0
    %391 = vmatpush1.bf16.msra.mxu0 0
    %392 = vmatprep.subr.bf16.mxu0 0
    %393 = vmatpush1.bf16.msra.mxu0 0
    %394 = vmatprep.subr.bf16.mxu0 0
    %395 = vmatpush1.bf16.msra.mxu0 0
    %396 = vmatprep.subr.bf16.mxu0 0
    %397 = vmatpush1.bf16.msra.mxu0 0
    %398 = vmatprep.subr.bf16.mxu0 0
    %399 = vmatpush1.bf16.msra.mxu0 0
    %400 = vmatprep.mubr.bf16.mxu0 0
    %401 = vmatmul.mubr.bf16.gmra.mrb[0].mxu0 %v127
    %v402 = vpop.f32.mrb[0].mxu0
    %v403 = vadd.f32 0.0, %v402
    %v404 = vpop.f32.mrb[0].mxu0
    %v405 = vadd.f32 0.0, %v404
    %v406 = vpop.f32.mrb[0].mxu0
    %v407 = vadd.f32 0.0, %v406
    %v408 = vpop.f32.mrb[0].mxu0
    %v409 = vadd.f32 0.0, %v408
    %410 = vmatprep.mubr.bf16.mxu0 0
    %411 = vmatmul.mubr.bf16.gmra.mrb[0].mxu0 %v128
    %v412 = vpop.f32.mrb[0].mxu0
    %v413 = vadd.f32 0.0, %v412
    %v414 = vpop.f32.mrb[0].mxu0
    %v415 = vadd.f32 0.0, %v414
    %v416 = vpop.f32.mrb[0].mxu0
    %v417 = vadd.f32 0.0, %v416
    %v418 = vpop.f32.mrb[0].mxu0
    %v419 = vadd.f32 0.0, %v418
    %420 = vmatprep.mubr.bf16.mxu0 0
    %421 = vmatmul.mubr.bf16.gmra.mrb[0].mxu0 %v129
    %v422 = vpop.f32.mrb[0].mxu0
    %v423 = vadd.f32 0.0, %v422
    %v424 = vpop.f32.mrb[0].mxu0
    %v425 = vadd.f32 0.0, %v424
    %v426 = vpop.f32.mrb[0].mxu0
    %v427 = vadd.f32 0.0, %v426
    %v428 = vpop.f32.mrb[0].mxu0
    %v429 = vadd.f32 0.0, %v428
    %430 = vmatprep.mubr.bf16.mxu0 0
    %431 = vmatmul.mubr.bf16.gmra.mrb[0].mxu0 %v130
    %v432 = vpop.f32.mrb[0].mxu0
    %v433 = vadd.f32 0.0, %v432
    %v434 = vpop.f32.mrb[0].mxu0
    %v435 = vadd.f32 0.0, %v434
    %v436 = vpop.f32.mrb[0].mxu0
    %v437 = vadd.f32 0.0, %v436
    %v438 = vpop.f32.mrb[0].mxu0
    %v439 = vadd.f32 0.0, %v438
    %440 = vmatprep.mubr.bf16.mxu0 0
    %441 = vmatmul.mubr.bf16.gmra.mrb[0].mxu0 %v131
    %v442 = vpop.f32.mrb[0].mxu0
    %v443 = vadd.f32 0.0, %v442
    %v444 = vpop.f32.mrb[0].mxu0
    %v445 = vadd.f32 0.0, %v444
    %v446 = vpop.f32.mrb[0].mxu0
    %v447 = vadd.f32 0.0, %v446
    %v448 = vpop.f32.mrb[0].mxu0
    %v449 = vadd.f32 0.0, %v448
    %450 = vmatprep.mubr.bf16.mxu0 0
    %451 = vmatmul.mubr.bf16.gmra.mrb[0].mxu0 %v132
    %v452 = vpop.f32.mrb[0].mxu0
    %v453 = vadd.f32 0.0, %v452
    %v454 = vpop.f32.mrb[0].mxu0
    %v455 = vadd.f32 0.0, %v454
    %v456 = vpop.f32.mrb[0].mxu0
    %v457 = vadd.f32 0.0, %v456
    %v458 = vpop.f32.mrb[0].mxu0
    %v459 = vadd.f32 0.0, %v458
    %460 = vmatprep.mubr.bf16.mxu0 0
    %461 = vmatmul.mubr.bf16.gmra.mrb[0].mxu0 %v133
    %v462 = vpop.f32.mrb[0].mxu0
    %v463 = vadd.f32 0.0, %v462
    %v464 = vpop.f32.mrb[0].mxu0
    %v465 = vadd.f32 0.0, %v464
    %v466 = vpop.f32.mrb[0].mxu0
    %v467 = vadd.f32 0.0, %v466
    %v468 = vpop.f32.mrb[0].mxu0
    %v469 = vadd.f32 0.0, %v468
    %470 = vmatprep.mubr.bf16.mxu0 0
    %471 = vmatmul.mubr.bf16.gmra.mrb[0].mxu0 %v134
    %v472 = vpop.f32.mrb[0].mxu0
    %v473 = vadd.f32 0.0, %v472
    %v474 = vpop.f32.mrb[0].mxu0
    %v475 = vadd.f32 0.0, %v474
    %v476 = vpop.f32.mrb[0].mxu0
    %v477 = vadd.f32 0.0, %v476
    %v478 = vpop.f32.mrb[0].mxu0
    %v479 = vadd.f32 0.0, %v478
    %480 = vmatprep.mubr.bf16.mxu0 0
    %481 = vmatmul.mubr.bf16.gmra.mrb[0].mxu0 %v135
    %v482 = vpop.f32.mrb[0].mxu0
    %v483 = vadd.f32 0.0, %v482
    %v484 = vpop.f32.mrb[0].mxu0
    %v485 = vadd.f32 0.0, %v484
    %v486 = vpop.f32.mrb[0].mxu0
    %v487 = vadd.f32 0.0, %v486
    %v488 = vpop.f32.mrb[0].mxu0
    %v489 = vadd.f32 0.0, %v488
    %490 = vmatprep.mubr.bf16.mxu0 0
    %491 = vmatmul.mubr.bf16.gmra.mrb[0].mxu0 %v136
    %v492 = vpop.f32.mrb[0].mxu0
    %v493 = vadd.f32 0.0, %v492
    %v494 = vpop.f32.mrb[0].mxu0
    %v495 = vadd.f32 0.0, %v494
    %v496 = vpop.f32.mrb[0].mxu0
    %v497 = vadd.f32 0.0, %v496
    %v498 = vpop.f32.mrb[0].mxu0
    %v499 = vadd.f32 0.0, %v498
    %500 = vmatprep.mubr.bf16.mxu0 0
    %501 = vmatmul.mubr.bf16.gmra.mrb[0].mxu0 %v137
    %v502 = vpop.f32.mrb[0].mxu0
    %v503 = vadd.f32 0.0, %v502
    %v504 = vpop.f32.mrb[0].mxu0
    %v505 = vadd.f32 0.0, %v504
    %v506 = vpop.f32.mrb[0].mxu0
    %v507 = vadd.f32 0.0, %v506
    %v508 = vpop.f32.mrb[0].mxu0
    %v509 = vadd.f32 0.0, %v508
    %510 = vmatprep.mubr.bf16.mxu0 0
    %511 = vmatmul.mubr.bf16.gmra.mrb[0].mxu0 %v138
    %v512 = vpop.f32.mrb[0].mxu0
    %v513 = vadd.f32 0.0, %v512
    %v514 = vpop.f32.mrb[0].mxu0
    %v515 = vadd.f32 0.0, %v514
    %v516 = vpop.f32.mrb[0].mxu0
    %v517 = vadd.f32 0.0, %v516
    %v518 = vpop.f32.mrb[0].mxu0
    %v519 = vadd.f32 0.0, %v518
    %520 = vmatprep.mubr.bf16.mxu0 0
    %521 = vmatmul.mubr.bf16.gmra.mrb[0].mxu0 %v139
    %v522 = vpop.f32.mrb[0].mxu0
    %v523 = vadd.f32 0.0, %v522
    %v524 = vpop.f32.mrb[0].mxu0
    %v525 = vadd.f32 0.0, %v524
    %v526 = vpop.f32.mrb[0].mxu0
    %v527 = vadd.f32 0.0, %v526
    %v528 = vpop.f32.mrb[0].mxu0
    %v529 = vadd.f32 0.0, %v528
    %530 = vmatprep.mubr.bf16.mxu0 0
    %531 = vmatmul.mubr.bf16.gmra.mrb[0].mxu0 %v140
    %v532 = vpop.f32.mrb[0].mxu0
    %v533 = vadd.f32 0.0, %v532
    %v534 = vpop.f32.mrb[0].mxu0
    %v535 = vadd.f32 0.0, %v534
    %v536 = vpop.f32.mrb[0].mxu0
    %v537 = vadd.f32 0.0, %v536
    %v538 = vpop.f32.mrb[0].mxu0
    %v539 = vadd.f32 0.0, %v538
    %540 = vmatprep.mubr.bf16.mxu0 0
    %541 = vmatmul.mubr.bf16.gmra.mrb[0].mxu0 %v141
    %v542 = vpop.f32.mrb[0].mxu0
    %v543 = vadd.f32 0.0, %v542
    %v544 = vpop.f32.mrb[0].mxu0
    %v545 = vadd.f32 0.0, %v544
    %v546 = vpop.f32.mrb[0].mxu0
    %v547 = vadd.f32 0.0, %v546
    %v548 = vpop.f32.mrb[0].mxu0
    %v549 = vadd.f32 0.0, %v548
    %550 = vmatprep.mubr.bf16.mxu0 0
    %551 = vmatmul.mubr.bf16.gmra.mrb[0].mxu0 %v142
    %v552 = vpop.f32.mrb[0].mxu0
    %v553 = vadd.f32 0.0, %v552
    %v554 = vpop.f32.mrb[0].mxu0
    %v555 = vadd.f32 0.0, %v554
    %v556 = vpop.f32.mrb[0].mxu0
    %v557 = vadd.f32 0.0, %v556
    %v558 = vpop.f32.mrb[0].mxu0
    %v559 = vadd.f32 0.0, %v558
    %560 = vmatprep.mubr.bf16.mxu0 0
    %561 = vmatmul.mubr.bf16.gmra.mrb[0].mxu0 %v143
    %v562 = vpop.f32.mrb[0].mxu0
    %v563 = vadd.f32 0.0, %v562
    %v564 = vpop.f32.mrb[0].mxu0
    %v565 = vadd.f32 0.0, %v564
    %v566 = vpop.f32.mrb[0].mxu0
    %v567 = vadd.f32 0.0, %v566
    %v568 = vpop.f32.mrb[0].mxu0
    %v569 = vadd.f32 0.0, %v568
    %570 = vdwg.mxu0
    %571 = vmatprep.subr.bf16.mxu0 %v307
    %572 = vmatpush1.bf16.msra.mxu0 %v306
    %573 = vmatprep.subr.bf16.mxu0 %v311
    %574 = vmatpush1.bf16.msra.mxu0 %v310
    %575 = vmatprep.subr.bf16.mxu0 %v315
    %576 = vmatpush1.bf16.msra.mxu0 %v314
    %577 = vmatprep.subr.bf16.mxu0 %v319
    %578 = vmatpush1.bf16.msra.mxu0 %v318
    %579 = vmatprep.subr.bf16.mxu0 %v323
    %580 = vmatpush1.bf16.msra.mxu0 %v322
    %581 = vmatprep.subr.bf16.mxu0 %v327
    %582 = vmatpush1.bf16.msra.mxu0 %v326
    %583 = vmatprep.subr.bf16.mxu0 %v331
    %584 = vmatpush1.bf16.msra.mxu0 %v330
    %585 = vmatprep.subr.bf16.mxu0 %v335
    %586 = vmatpush1.bf16.msra.mxu0 %v334
    %587 = vmatprep.subr.bf16.mxu0 0
    %588 = vmatpush1.bf16.msra.mxu0 0
    %589 = vmatprep.subr.bf16.mxu0 0
    %590 = vmatpush1.bf16.msra.mxu0 0
    %591 = vmatprep.subr.bf16.mxu0 0
    %592 = vmatpush1.bf16.msra.mxu0 0
    %593 = vmatprep.subr.bf16.mxu0 0
    %594 = vmatpush1.bf16.msra.mxu0 0
    %595 = vmatprep.subr.bf16.mxu0 0
    %596 = vmatpush1.bf16.msra.mxu0 0
    %597 = vmatprep.subr.bf16.mxu0 0
    %598 = vmatpush1.bf16.msra.mxu0 0
    %599 = vmatprep.subr.bf16.mxu0 0
    %600 = vmatpush1.bf16.msra.mxu0 0
    %601 = vmatprep.subr.bf16.mxu0 0
    %602 = vmatpush1.bf16.msra.mxu0 0
    %603 = vmatprep.mubr.bf16.mxu0 0
    %604 = vmatmul.mubr.bf16.gmra.mrb[0].mxu0 %v127
    %v605 = vpop.f32.mrb[0].mxu0
    %v606 = vadd.f32 0.0, %v605
    %v607 = vpop.f32.mrb[0].mxu0
    %v608 = vadd.f32 0.0, %v607
    %v609 = vpop.f32.mrb[0].mxu0
    %v610 = vadd.f32 0.0, %v609
    %v611 = vpop.f32.mrb[0].mxu0
    %v612 = vadd.f32 0.0, %v611
    %613 = vmatprep.mubr.bf16.mxu0 0
    %614 = vmatmul.mubr.bf16.gmra.mrb[0].mxu0 %v128
    %v615 = vpop.f32.mrb[0].mxu0
    %v616 = vadd.f32 0.0, %v615
    %v617 = vpop.f32.mrb[0].mxu0
    %v618 = vadd.f32 0.0, %v617
    %v619 = vpop.f32.mrb[0].mxu0
    %v620 = vadd.f32 0.0, %v619
    %v621 = vpop.f32.mrb[0].mxu0
    %v622 = vadd.f32 0.0, %v621
    %623 = vmatprep.mubr.bf16.mxu0 0
    %624 = vmatmul.mubr.bf16.gmra.mrb[0].mxu0 %v129
    %v625 = vpop.f32.mrb[0].mxu0
    %v626 = vadd.f32 0.0, %v625
    %v627 = vpop.f32.mrb[0].mxu0
    %v628 = vadd.f32 0.0, %v627
    %v629 = vpop.f32.mrb[0].mxu0
    %v630 = vadd.f32 0.0, %v629
    %v631 = vpop.f32.mrb[0].mxu0
    %v632 = vadd.f32 0.0, %v631
    %633 = vmatprep.mubr.bf16.mxu0 0
    %634 = vmatmul.mubr.bf16.gmra.mrb[0].mxu0 %v130
    %v635 = vpop.f32.mrb[0].mxu0
    %v636 = vadd.f32 0.0, %v635
    %v637 = vpop.f32.mrb[0].mxu0
    %v638 = vadd.f32 0.0, %v637
    %v639 = vpop.f32.mrb[0].mxu0
    %v640 = vadd.f32 0.0, %v639
    %v641 = vpop.f32.mrb[0].mxu0
    %v642 = vadd.f32 0.0, %v641
    %643 = vmatprep.mubr.bf16.mxu0 0
    %644 = vmatmul.mubr.bf16.gmra.mrb[0].mxu0 %v131
    %v645 = vpop.f32.mrb[0].mxu0
    %v646 = vadd.f32 0.0, %v645
    %v647 = vpop.f32.mrb[0].mxu0
    %v648 = vadd.f32 0.0, %v647
    %v649 = vpop.f32.mrb[0].mxu0
    %v650 = vadd.f32 0.0, %v649
    %v651 = vpop.f32.mrb[0].mxu0
    %v652 = vadd.f32 0.0, %v651
    %653 = vmatprep.mubr.bf16.mxu0 0
    %654 = vmatmul.mubr.bf16.gmra.mrb[0].mxu0 %v132
    %v655 = vpop.f32.mrb[0].mxu0
    %v656 = vadd.f32 0.0, %v655
    %v657 = vpop.f32.mrb[0].mxu0
    %v658 = vadd.f32 0.0, %v657
    %v659 = vpop.f32.mrb[0].mxu0
    %v660 = vadd.f32 0.0, %v659
    %v661 = vpop.f32.mrb[0].mxu0
    %v662 = vadd.f32 0.0, %v661
    %663 = vmatprep.mubr.bf16.mxu0 0
    %664 = vmatmul.mubr.bf16.gmra.mrb[0].mxu0 %v133
    %v665 = vpop.f32.mrb[0].mxu0
    %v666 = vadd.f32 0.0, %v665
    %v667 = vpop.f32.mrb[0].mxu0
    %v668 = vadd.f32 0.0, %v667
    %v669 = vpop.f32.mrb[0].mxu0
    %v670 = vadd.f32 0.0, %v669
    %v671 = vpop.f32.mrb[0].mxu0
    %v672 = vadd.f32 0.0, %v671
    %673 = vmatprep.mubr.bf16.mxu0 0
    %674 = vmatmul.mubr.bf16.gmra.mrb[0].mxu0 %v134
    %v675 = vpop.f32.mrb[0].mxu0
    %v676 = vadd.f32 0.0, %v675
    %v677 = vpop.f32.mrb[0].mxu0
    %v678 = vadd.f32 0.0, %v677
    %v679 = vpop.f32.mrb[0].mxu0
    %v680 = vadd.f32 0.0, %v679
    %v681 = vpop.f32.mrb[0].mxu0
    %v682 = vadd.f32 0.0, %v681
    %683 = vmatprep.mubr.bf16.mxu0 0
    %684 = vmatmul.mubr.bf16.gmra.mrb[0].mxu0 %v135
    %v685 = vpop.f32.mrb[0].mxu0
    %v686 = vadd.f32 0.0, %v685
    %v687 = vpop.f32.mrb[0].mxu0
    %v688 = vadd.f32 0.0, %v687
    %v689 = vpop.f32.mrb[0].mxu0
    %v690 = vadd.f32 0.0, %v689
    %v691 = vpop.f32.mrb[0].mxu0
    %v692 = vadd.f32 0.0, %v691
    %693 = vmatprep.mubr.bf16.mxu0 0
    %694 = vmatmul.mubr.bf16.gmra.mrb[0].mxu0 %v136
    %v695 = vpop.f32.mrb[0].mxu0
    %v696 = vadd.f32 0.0, %v695
    %v697 = vpop.f32.mrb[0].mxu0
    %v698 = vadd.f32 0.0, %v697
    %v699 = vpop.f32.mrb[0].mxu0
    %v700 = vadd.f32 0.0, %v699
    %v701 = vpop.f32.mrb[0].mxu0
    %v702 = vadd.f32 0.0, %v701
    %703 = vmatprep.mubr.bf16.mxu0 0
    %704 = vmatmul.mubr.bf16.gmra.mrb[0].mxu0 %v137
    %v705 = vpop.f32.mrb[0].mxu0
    %v706 = vadd.f32 0.0, %v705
    %v707 = vpop.f32.mrb[0].mxu0
    %v708 = vadd.f32 0.0, %v707
    %v709 = vpop.f32.mrb[0].mxu0
    %v710 = vadd.f32 0.0, %v709
    %v711 = vpop.f32.mrb[0].mxu0
    %v712 = vadd.f32 0.0, %v711
    %713 = vmatprep.mubr.bf16.mxu0 0
    %714 = vmatmul.mubr.bf16.gmra.mrb[0].mxu0 %v138
    %v715 = vpop.f32.mrb[0].mxu0
    %v716 = vadd.f32 0.0, %v715
    %v717 = vpop.f32.mrb[0].mxu0
    %v718 = vadd.f32 0.0, %v717
    %v719 = vpop.f32.mrb[0].mxu0
    %v720 = vadd.f32 0.0, %v719
    %v721 = vpop.f32.mrb[0].mxu0
    %v722 = vadd.f32 0.0, %v721
    %723 = vmatprep.mubr.bf16.mxu0 0
    %724 = vmatmul.mubr.bf16.gmra.mrb[0].mxu0 %v139
    %v725 = vpop.f32.mrb[0].mxu0
    %v726 = vadd.f32 0.0, %v725
    %v727 = vpop.f32.mrb[0].mxu0
    %v728 = vadd.f32 0.0, %v727
    %v729 = vpop.f32.mrb[0].mxu0
    %v730 = vadd.f32 0.0, %v729
    %v731 = vpop.f32.mrb[0].mxu0
    %v732 = vadd.f32 0.0, %v731
    %733 = vmatprep.mubr.bf16.mxu0 0
    %734 = vmatmul.mubr.bf16.gmra.mrb[0].mxu0 %v140
    %v735 = vpop.f32.mrb[0].mxu0
    %v736 = vadd.f32 0.0, %v735
    %v737 = vpop.f32.mrb[0].mxu0
    %v738 = vadd.f32 0.0, %v737
    %v739 = vpop.f32.mrb[0].mxu0
    %v740 = vadd.f32 0.0, %v739
    %v741 = vpop.f32.mrb[0].mxu0
    %v742 = vadd.f32 0.0, %v741
    %743 = vmatprep.mubr.bf16.mxu0 0
    %744 = vmatmul.mubr.bf16.gmra.mrb[0].mxu0 %v141
    %v745 = vpop.f32.mrb[0].mxu0
    %v746 = vadd.f32 0.0, %v745
    %v747 = vpop.f32.mrb[0].mxu0
    %v748 = vadd.f32 0.0, %v747
    %v749 = vpop.f32.mrb[0].mxu0
    %v750 = vadd.f32 0.0, %v749
    %v751 = vpop.f32.mrb[0].mxu0
    %v752 = vadd.f32 0.0, %v751
    %753 = vmatprep.mubr.bf16.mxu0 0
    %754 = vmatmul.mubr.bf16.gmra.mrb[0].mxu0 %v142
    %v755 = vpop.f32.mrb[0].mxu0
    %v756 = vadd.f32 0.0, %v755
    %v757 = vpop.f32.mrb[0].mxu0
    %v758 = vadd.f32 0.0, %v757
    %v759 = vpop.f32.mrb[0].mxu0
    %v760 = vadd.f32 0.0, %v759
    %v761 = vpop.f32.mrb[0].mxu0
    %v762 = vadd.f32 0.0, %v761
    %763 = vmatprep.mubr.bf16.mxu0 0
    %764 = vmatmul.mubr.bf16.gmra.mrb[0].mxu0 %v143
    %v765 = vpop.f32.mrb[0].mxu0
    %v766 = vadd.f32 0.0, %v765
    %v767 = vpop.f32.mrb[0].mxu0
    %v768 = vadd.f32 0.0, %v767
    %v769 = vpop.f32.mrb[0].mxu0
    %v770 = vadd.f32 0.0, %v769
    %v771 = vpop.f32.mrb[0].mxu0
    %v772 = vadd.f32 0.0, %v771
    %773 = vdwg.mxu0
    %v806 = vunpack.c.l.b16 %v144
    %v807 = vunpack.c.h.b16 %v144
    %v808 = vunpack.c.l.b16 %v145
    %v809 = vunpack.c.h.b16 %v145
    %v810 = vunpack.c.l.b16 %v146
    %v811 = vunpack.c.h.b16 %v146
    %v812 = vunpack.c.l.b16 %v147
    %v813 = vunpack.c.h.b16 %v147
    %v814 = vunpack.c.l.b16 %v148
    %v815 = vunpack.c.h.b16 %v148
    %v816 = vunpack.c.l.b16 %v149
    %v817 = vunpack.c.h.b16 %v149
    %v818 = vunpack.c.l.b16 %v150
    %v819 = vunpack.c.h.b16 %v150
    %v820 = vunpack.c.l.b16 %v151
    %v821 = vunpack.c.h.b16 %v151
    %v822 = vunpack.c.l.b16 %v152
    %v823 = vunpack.c.h.b16 %v152
    %v824 = vunpack.c.l.b16 %v153
    %v825 = vunpack.c.h.b16 %v153
    %v826 = vunpack.c.l.b16 %v154
    %v827 = vunpack.c.h.b16 %v154
    %v828 = vunpack.c.l.b16 %v155
    %v829 = vunpack.c.h.b16 %v155
    %v830 = vunpack.c.l.b16 %v156
    %v831 = vunpack.c.h.b16 %v156
    %v832 = vunpack.c.l.b16 %v157
    %v833 = vunpack.c.h.b16 %v157
    %v834 = vunpack.c.l.b16 %v158
    %v835 = vunpack.c.h.b16 %v158
    %v836 = vunpack.c.l.b16 %v159
    %v837 = vunpack.c.h.b16 %v159
    %v838 = vunpack.c.l.b16 %v160
    %v839 = vunpack.c.h.b16 %v160
    %v840 = vunpack.c.l.b16 %v161
    %v841 = vunpack.c.h.b16 %v161
    %v842 = vunpack.c.l.b16 %v162
    %v843 = vunpack.c.h.b16 %v162
    %v844 = vunpack.c.l.b16 %v163
    %v845 = vunpack.c.h.b16 %v163
    %v846 = vunpack.c.l.b16 %v164
    %v847 = vunpack.c.h.b16 %v164
    %v848 = vunpack.c.l.b16 %v165
    %v849 = vunpack.c.h.b16 %v165
    %v850 = vunpack.c.l.b16 %v166
    %v851 = vunpack.c.h.b16 %v166
    %v852 = vunpack.c.l.b16 %v167
    %v853 = vunpack.c.h.b16 %v167
    %v854 = vunpack.c.l.b16 %v168
    %v855 = vunpack.c.h.b16 %v168
    %v856 = vunpack.c.l.b16 %v169
    %v857 = vunpack.c.h.b16 %v169
    %v858 = vunpack.c.l.b16 %v170
    %v859 = vunpack.c.h.b16 %v170
    %v860 = vunpack.c.l.b16 %v171
    %v861 = vunpack.c.h.b16 %v171
    %v862 = vunpack.c.l.b16 %v172
    %v863 = vunpack.c.h.b16 %v172
    %v864 = vunpack.c.l.b16 %v173
    %v865 = vunpack.c.h.b16 %v173
    %v866 = vunpack.c.l.b16 %v174
    %v867 = vunpack.c.h.b16 %v174
    %v868 = vunpack.c.l.b16 %v175
    %v869 = vunpack.c.h.b16 %v175
    %v870 = vpack.c.b16 %v810, %v806
    %v871 = vpack.c.b16 %v811, %v807
    %v872 = vpack.c.b16 %v812, %v808
    %v873 = vpack.c.b16 %v813, %v809
    %v874 = vpack.c.b16 %v818, %v814
    %v875 = vpack.c.b16 %v819, %v815
    %v876 = vpack.c.b16 %v820, %v816
    %v877 = vpack.c.b16 %v821, %v817
    %v878 = vpack.c.b16 %v826, %v822
    %v879 = vpack.c.b16 %v827, %v823
    %v880 = vpack.c.b16 %v828, %v824
    %v881 = vpack.c.b16 %v829, %v825
    %v882 = vpack.c.b16 %v834, %v830
    %v883 = vpack.c.b16 %v835, %v831
    %v884 = vpack.c.b16 %v836, %v832
    %v885 = vpack.c.b16 %v837, %v833
    %v886 = vpack.c.b16 %v842, %v838
    %v887 = vpack.c.b16 %v843, %v839
    %v888 = vpack.c.b16 %v844, %v840
    %v889 = vpack.c.b16 %v845, %v841
    %v890 = vpack.c.b16 %v850, %v846
    %v891 = vpack.c.b16 %v851, %v847
    %v892 = vpack.c.b16 %v852, %v848
    %v893 = vpack.c.b16 %v853, %v849
    %v894 = vpack.c.b16 %v858, %v854
    %v895 = vpack.c.b16 %v859, %v855
    %v896 = vpack.c.b16 %v860, %v856
    %v897 = vpack.c.b16 %v861, %v857
    %v898 = vpack.c.b16 %v866, %v862
    %v899 = vpack.c.b16 %v867, %v863
    %v900 = vpack.c.b16 %v868, %v864
    %v901 = vpack.c.b16 %v869, %v865
    %934 = vmatprep.subr.bf16.mxu0 %v871
    %935 = vmatpush1.bf16.msra.mxu0 %v870
    %936 = vmatprep.subr.bf16.mxu0 %v875
    %937 = vmatpush1.bf16.msra.mxu0 %v874
    %938 = vmatprep.subr.bf16.mxu0 %v879
    %939 = vmatpush1.bf16.msra.mxu0 %v878
    %940 = vmatprep.subr.bf16.mxu0 %v883
    %941 = vmatpush1.bf16.msra.mxu0 %v882
    %942 = vmatprep.subr.bf16.mxu0 %v887
    %943 = vmatpush1.bf16.msra.mxu0 %v886
    %944 = vmatprep.subr.bf16.mxu0 %v891
    %945 = vmatpush1.bf16.msra.mxu0 %v890
    %946 = vmatprep.subr.bf16.mxu0 %v895
    %947 = vmatpush1.bf16.msra.mxu0 %v894
    %948 = vmatprep.subr.bf16.mxu0 %v899
    %949 = vmatpush1.bf16.msra.mxu0 %v898
    %950 = vmatprep.subr.bf16.mxu0 0
    %951 = vmatpush1.bf16.msra.mxu0 0
    %952 = vmatprep.subr.bf16.mxu0 0
    %953 = vmatpush1.bf16.msra.mxu0 0
    %954 = vmatprep.subr.bf16.mxu0 0
    %955 = vmatpush1.bf16.msra.mxu0 0
    %956 = vmatprep.subr.bf16.mxu0 0
    %957 = vmatpush1.bf16.msra.mxu0 0
    %958 = vmatprep.subr.bf16.mxu0 0
    %959 = vmatpush1.bf16.msra.mxu0 0
    %960 = vmatprep.subr.bf16.mxu0 0
    %961 = vmatpush1.bf16.msra.mxu0 0
    %962 = vmatprep.subr.bf16.mxu0 0
    %963 = vmatpush1.bf16.msra.mxu0 0
    %964 = vmatprep.subr.bf16.mxu0 0
    %965 = vmatpush1.bf16.msra.mxu0 0
    %966 = vmatprep.mubr.bf16.mxu0 0
    %967 = vmatmul.mubr.bf16.gmra.mrb[0].mxu0 %v126
    %v968 = vpop.f32.mrb[0].mxu0
    %v969 = vadd.f32 %v403, %v968
    %v970 = vpop.f32.mrb[0].mxu0
    %v971 = vadd.f32 %v405, %v970
    %v972 = vpop.f32.mrb[0].mxu0
    %v973 = vadd.f32 %v407, %v972
    %v974 = vpop.f32.mrb[0].mxu0
    %v975 = vadd.f32 %v409, %v974
    %976 = vmatprep.mubr.bf16.mxu0 0
    %977 = vmatmul.mubr.bf16.gmra.mrb[0].mxu0 %v127
    %v978 = vpop.f32.mrb[0].mxu0
    %v979 = vadd.f32 %v413, %v978
    %v980 = vpop.f32.mrb[0].mxu0
    %v981 = vadd.f32 %v415, %v980
    %v982 = vpop.f32.mrb[0].mxu0
    %v983 = vadd.f32 %v417, %v982
    %v984 = vpop.f32.mrb[0].mxu0
    %v985 = vadd.f32 %v419, %v984
    %986 = vmatprep.mubr.bf16.mxu0 0
    %987 = vmatmul.mubr.bf16.gmra.mrb[0].mxu0 %v128
    %v988 = vpop.f32.mrb[0].mxu0
    %v989 = vadd.f32 %v423, %v988
    %v990 = vpop.f32.mrb[0].mxu0
    %v991 = vadd.f32 %v425, %v990
    %v992 = vpop.f32.mrb[0].mxu0
    %v993 = vadd.f32 %v427, %v992
    %v994 = vpop.f32.mrb[0].mxu0
    %v995 = vadd.f32 %v429, %v994
    %996 = vmatprep.mubr.bf16.mxu0 0
    %997 = vmatmul.mubr.bf16.gmra.mrb[0].mxu0 %v129
    %v998 = vpop.f32.mrb[0].mxu0
    %v999 = vadd.f32 %v433, %v998
    %v1000 = vpop.f32.mrb[0].mxu0
    %v1001 = vadd.f32 %v435, %v1000
    %v1002 = vpop.f32.mrb[0].mxu0
    %v1003 = vadd.f32 %v437, %v1002
    %v1004 = vpop.f32.mrb[0].mxu0
    %v1005 = vadd.f32 %v439, %v1004
    %1006 = vmatprep.mubr.bf16.mxu0 0
    %1007 = vmatmul.mubr.bf16.gmra.mrb[0].mxu0 %v130
    %v1008 = vpop.f32.mrb[0].mxu0
    %v1009 = vadd.f32 %v443, %v1008
    %v1010 = vpop.f32.mrb[0].mxu0
    %v1011 = vadd.f32 %v445, %v1010
    %v1012 = vpop.f32.mrb[0].mxu0
    %v1013 = vadd.f32 %v447, %v1012
    %v1014 = vpop.f32.mrb[0].mxu0
    %v1015 = vadd.f32 %v449, %v1014
    %1016 = vmatprep.mubr.bf16.mxu0 0
    %1017 = vmatmul.mubr.bf16.gmra.mrb[0].mxu0 %v131
    %v1018 = vpop.f32.mrb[0].mxu0
    %v1019 = vadd.f32 %v453, %v1018
    %v1020 = vpop.f32.mrb[0].mxu0
    %v1021 = vadd.f32 %v455, %v1020
    %v1022 = vpop.f32.mrb[0].mxu0
    %v1023 = vadd.f32 %v457, %v1022
    %v1024 = vpop.f32.mrb[0].mxu0
    %v1025 = vadd.f32 %v459, %v1024
    %1026 = vmatprep.mubr.bf16.mxu0 0
    %1027 = vmatmul.mubr.bf16.gmra.mrb[0].mxu0 %v132
    %v1028 = vpop.f32.mrb[0].mxu0
    %v1029 = vadd.f32 %v463, %v1028
    %v1030 = vpop.f32.mrb[0].mxu0
    %v1031 = vadd.f32 %v465, %v1030
    %v1032 = vpop.f32.mrb[0].mxu0
    %v1033 = vadd.f32 %v467, %v1032
    %v1034 = vpop.f32.mrb[0].mxu0
    %v1035 = vadd.f32 %v469, %v1034
    %1036 = vmatprep.mubr.bf16.mxu0 0
    %1037 = vmatmul.mubr.bf16.gmra.mrb[0].mxu0 %v133
    %v1038 = vpop.f32.mrb[0].mxu0
    %v1039 = vadd.f32 %v473, %v1038
    %v1040 = vpop.f32.mrb[0].mxu0
    %v1041 = vadd.f32 %v475, %v1040
    %v1042 = vpop.f32.mrb[0].mxu0
    %v1043 = vadd.f32 %v477, %v1042
    %v1044 = vpop.f32.mrb[0].mxu0
    %v1045 = vadd.f32 %v479, %v1044
    %1046 = vmatprep.mubr.bf16.mxu0 0
    %1047 = vmatmul.mubr.bf16.gmra.mrb[0].mxu0 %v134
    %v1048 = vpop.f32.mrb[0].mxu0
    %v1049 = vadd.f32 %v483, %v1048
    %v1050 = vpop.f32.mrb[0].mxu0
    %v1051 = vadd.f32 %v485, %v1050
    %v1052 = vpop.f32.mrb[0].mxu0
    %v1053 = vadd.f32 %v487, %v1052
    %v1054 = vpop.f32.mrb[0].mxu0
    %v1055 = vadd.f32 %v489, %v1054
    %1056 = vmatprep.mubr.bf16.mxu0 0
    %1057 = vmatmul.mubr.bf16.gmra.mrb[0].mxu0 %v135
    %v1058 = vpop.f32.mrb[0].mxu0
    %v1059 = vadd.f32 %v493, %v1058
    %v1060 = vpop.f32.mrb[0].mxu0
    %v1061 = vadd.f32 %v495, %v1060
    %v1062 = vpop.f32.mrb[0].mxu0
    %v1063 = vadd.f32 %v497, %v1062
    %v1064 = vpop.f32.mrb[0].mxu0
    %v1065 = vadd.f32 %v499, %v1064
    %1066 = vmatprep.mubr.bf16.mxu0 0
    %1067 = vmatmul.mubr.bf16.gmra.mrb[0].mxu0 %v136
    %v1068 = vpop.f32.mrb[0].mxu0
    %v1069 = vadd.f32 %v503, %v1068
    %v1070 = vpop.f32.mrb[0].mxu0
    %v1071 = vadd.f32 %v505, %v1070
    %v1072 = vpop.f32.mrb[0].mxu0
    %v1073 = vadd.f32 %v507, %v1072
    %v1074 = vpop.f32.mrb[0].mxu0
    %v1075 = vadd.f32 %v509, %v1074
    %1076 = vmatprep.mubr.bf16.mxu0 0
    %1077 = vmatmul.mubr.bf16.gmra.mrb[0].mxu0 %v137
    %v1078 = vpop.f32.mrb[0].mxu0
    %v1079 = vadd.f32 %v513, %v1078
    %v1080 = vpop.f32.mrb[0].mxu0
    %v1081 = vadd.f32 %v515, %v1080
    %v1082 = vpop.f32.mrb[0].mxu0
    %v1083 = vadd.f32 %v517, %v1082
    %v1084 = vpop.f32.mrb[0].mxu0
    %v1085 = vadd.f32 %v519, %v1084
    %1086 = vmatprep.mubr.bf16.mxu0 0
    %1087 = vmatmul.mubr.bf16.gmra.mrb[0].mxu0 %v138
    %v1088 = vpop.f32.mrb[0].mxu0
    %v1089 = vadd.f32 %v523, %v1088
    %v1090 = vpop.f32.mrb[0].mxu0
    %v1091 = vadd.f32 %v525, %v1090
    %v1092 = vpop.f32.mrb[0].mxu0
    %v1093 = vadd.f32 %v527, %v1092
    %v1094 = vpop.f32.mrb[0].mxu0
    %v1095 = vadd.f32 %v529, %v1094
    %1096 = vmatprep.mubr.bf16.mxu0 0
    %1097 = vmatmul.mubr.bf16.gmra.mrb[0].mxu0 %v139
    %v1098 = vpop.f32.mrb[0].mxu0
    %v1099 = vadd.f32 %v533, %v1098
    %v1100 = vpop.f32.mrb[0].mxu0
    %v1101 = vadd.f32 %v535, %v1100
    %v1102 = vpop.f32.mrb[0].mxu0
    %v1103 = vadd.f32 %v537, %v1102
    %v1104 = vpop.f32.mrb[0].mxu0
    %v1105 = vadd.f32 %v539, %v1104
    %1106 = vmatprep.mubr.bf16.mxu0 0
    %1107 = vmatmul.mubr.bf16.gmra.mrb[0].mxu0 %v140
    %v1108 = vpop.f32.mrb[0].mxu0
    %v1109 = vadd.f32 %v543, %v1108
    %v1110 = vpop.f32.mrb[0].mxu0
    %v1111 = vadd.f32 %v545, %v1110
    %v1112 = vpop.f32.mrb[0].mxu0
    %v1113 = vadd.f32 %v547, %v1112
    %v1114 = vpop.f32.mrb[0].mxu0
    %v1115 = vadd.f32 %v549, %v1114
    %1116 = vmatprep.mubr.bf16.mxu0 0
    %1117 = vmatmul.mubr.bf16.gmra.mrb[0].mxu0 %v141
    %v1118 = vpop.f32.mrb[0].mxu0
    %v1119 = vadd.f32 %v553, %v1118
    %v1120 = vpop.f32.mrb[0].mxu0
    %v1121 = vadd.f32 %v555, %v1120
    %v1122 = vpop.f32.mrb[0].mxu0
    %v1123 = vadd.f32 %v557, %v1122
    %v1124 = vpop.f32.mrb[0].mxu0
    %v1125 = vadd.f32 %v559, %v1124
    %1126 = vmatprep.mubr.bf16.mxu0 0
    %1127 = vmatmul.mubr.bf16.gmra.mrb[0].mxu0 %v142
    %v1128 = vpop.f32.mrb[0].mxu0
    %v1129 = vadd.f32 %v563, %v1128
    %v1130 = vpop.f32.mrb[0].mxu0
    %v1131 = vadd.f32 %v565, %v1130
    %v1132 = vpop.f32.mrb[0].mxu0
    %v1133 = vadd.f32 %v567, %v1132
    %v1134 = vpop.f32.mrb[0].mxu0
    %v1135 = vadd.f32 %v569, %v1134
    %1136 = vdwg.mxu0
    %1137 = vmatprep.subr.bf16.mxu0 %v873
    %1138 = vmatpush1.bf16.msra.mxu0 %v872
    %1139 = vmatprep.subr.bf16.mxu0 %v877
    %1140 = vmatpush1.bf16.msra.mxu0 %v876
    %1141 = vmatprep.subr.bf16.mxu0 %v881
    %1142 = vmatpush1.bf16.msra.mxu0 %v880
    %1143 = vmatprep.subr.bf16.mxu0 %v885
    %1144 = vmatpush1.bf16.msra.mxu0 %v884
    %1145 = vmatprep.subr.bf16.mxu0 %v889
    %1146 = vmatpush1.bf16.msra.mxu0 %v888
    %1147 = vmatprep.subr.bf16.mxu0 %v893
    %1148 = vmatpush1.bf16.msra.mxu0 %v892
    %1149 = vmatprep.subr.bf16.mxu0 %v897
    %1150 = vmatpush1.bf16.msra.mxu0 %v896
    %1151 = vmatprep.subr.bf16.mxu0 %v901
    %1152 = vmatpush1.bf16.msra.mxu0 %v900
    %1153 = vmatprep.subr.bf16.mxu0 0
    %1154 = vmatpush1.bf16.msra.mxu0 0
    %1155 = vmatprep.subr.bf16.mxu0 0
    %1156 = vmatpush1.bf16.msra.mxu0 0
    %1157 = vmatprep.subr.bf16.mxu0 0
    %1158 = vmatpush1.bf16.msra.mxu0 0
    %1159 = vmatprep.subr.bf16.mxu0 0
    %1160 = vmatpush1.bf16.msra.mxu0 0
    %1161 = vmatprep.subr.bf16.mxu0 0
    %1162 = vmatpush1.bf16.msra.mxu0 0
    %1163 = vmatprep.subr.bf16.mxu0 0
    %1164 = vmatpush1.bf16.msra.mxu0 0
    %1165 = vmatprep.subr.bf16.mxu0 0
    %1166 = vmatpush1.bf16.msra.mxu0 0
    %1167 = vmatprep.subr.bf16.mxu0 0
    %1168 = vmatpush1.bf16.msra.mxu0 0
    %1169 = vmatprep.mubr.bf16.mxu0 0
    %1170 = vmatmul.mubr.bf16.gmra.mrb[0].mxu0 %v126
    %v1171 = vpop.f32.mrb[0].mxu0
    %v1172 = vadd.f32 %v606, %v1171
    %v1173 = vpop.f32.mrb[0].mxu0
    %v1174 = vadd.f32 %v608, %v1173
    %v1175 = vpop.f32.mrb[0].mxu0
    %v1176 = vadd.f32 %v610, %v1175
    %v1177 = vpop.f32.mrb[0].mxu0
    %v1178 = vadd.f32 %v612, %v1177
    %1179 = vmatprep.mubr.bf16.mxu0 0
    %1180 = vmatmul.mubr.bf16.gmra.mrb[0].mxu0 %v127
    %v1181 = vpop.f32.mrb[0].mxu0
    %v1182 = vadd.f32 %v616, %v1181
    %v1183 = vpop.f32.mrb[0].mxu0
    %v1184 = vadd.f32 %v618, %v1183
    %v1185 = vpop.f32.mrb[0].mxu0
    %v1186 = vadd.f32 %v620, %v1185
    %v1187 = vpop.f32.mrb[0].mxu0
    %v1188 = vadd.f32 %v622, %v1187
    %1189 = vmatprep.mubr.bf16.mxu0 0
    %1190 = vmatmul.mubr.bf16.gmra.mrb[0].mxu0 %v128
    %v1191 = vpop.f32.mrb[0].mxu0
    %v1192 = vadd.f32 %v626, %v1191
    %v1193 = vpop.f32.mrb[0].mxu0
    %v1194 = vadd.f32 %v628, %v1193
    %v1195 = vpop.f32.mrb[0].mxu0
    %v1196 = vadd.f32 %v630, %v1195
    %v1197 = vpop.f32.mrb[0].mxu0
    %v1198 = vadd.f32 %v632, %v1197
    %1199 = vmatprep.mubr.bf16.mxu0 0
    %1200 = vmatmul.mubr.bf16.gmra.mrb[0].mxu0 %v129
    %v1201 = vpop.f32.mrb[0].mxu0
    %v1202 = vadd.f32 %v636, %v1201
    %v1203 = vpop.f32.mrb[0].mxu0
    %v1204 = vadd.f32 %v638, %v1203
    %v1205 = vpop.f32.mrb[0].mxu0
    %v1206 = vadd.f32 %v640, %v1205
    %v1207 = vpop.f32.mrb[0].mxu0
    %v1208 = vadd.f32 %v642, %v1207
    %1209 = vmatprep.mubr.bf16.mxu0 0
    %1210 = vmatmul.mubr.bf16.gmra.mrb[0].mxu0 %v130
    %v1211 = vpop.f32.mrb[0].mxu0
    %v1212 = vadd.f32 %v646, %v1211
    %v1213 = vpop.f32.mrb[0].mxu0
    %v1214 = vadd.f32 %v648, %v1213
    %v1215 = vpop.f32.mrb[0].mxu0
    %v1216 = vadd.f32 %v650, %v1215
    %v1217 = vpop.f32.mrb[0].mxu0
    %v1218 = vadd.f32 %v652, %v1217
    %1219 = vmatprep.mubr.bf16.mxu0 0
    %1220 = vmatmul.mubr.bf16.gmra.mrb[0].mxu0 %v131
    %v1221 = vpop.f32.mrb[0].mxu0
    %v1222 = vadd.f32 %v656, %v1221
    %v1223 = vpop.f32.mrb[0].mxu0
    %v1224 = vadd.f32 %v658, %v1223
    %v1225 = vpop.f32.mrb[0].mxu0
    %v1226 = vadd.f32 %v660, %v1225
    %v1227 = vpop.f32.mrb[0].mxu0
    %v1228 = vadd.f32 %v662, %v1227
    %1229 = vmatprep.mubr.bf16.mxu0 0
    %1230 = vmatmul.mubr.bf16.gmra.mrb[0].mxu0 %v132
    %v1231 = vpop.f32.mrb[0].mxu0
    %v1232 = vadd.f32 %v666, %v1231
    %v1233 = vpop.f32.mrb[0].mxu0
    %v1234 = vadd.f32 %v668, %v1233
    %v1235 = vpop.f32.mrb[0].mxu0
    %v1236 = vadd.f32 %v670, %v1235
    %v1237 = vpop.f32.mrb[0].mxu0
    %v1238 = vadd.f32 %v672, %v1237
    %1239 = vmatprep.mubr.bf16.mxu0 0
    %1240 = vmatmul.mubr.bf16.gmra.mrb[0].mxu0 %v133
    %v1241 = vpop.f32.mrb[0].mxu0
    %v1242 = vadd.f32 %v676, %v1241
    %v1243 = vpop.f32.mrb[0].mxu0
    %v1244 = vadd.f32 %v678, %v1243
    %v1245 = vpop.f32.mrb[0].mxu0
    %v1246 = vadd.f32 %v680, %v1245
    %v1247 = vpop.f32.mrb[0].mxu0
    %v1248 = vadd.f32 %v682, %v1247
    %1249 = vmatprep.mubr.bf16.mxu0 0
    %1250 = vmatmul.mubr.bf16.gmra.mrb[0].mxu0 %v134
    %v1251 = vpop.f32.mrb[0].mxu0
    %v1252 = vadd.f32 %v686, %v1251
    %v1253 = vpop.f32.mrb[0].mxu0
    %v1254 = vadd.f32 %v688, %v1253
    %v1255 = vpop.f32.mrb[0].mxu0
    %v1256 = vadd.f32 %v690, %v1255
    %v1257 = vpop.f32.mrb[0].mxu0
    %v1258 = vadd.f32 %v692, %v1257
    %1259 = vmatprep.mubr.bf16.mxu0 0
    %1260 = vmatmul.mubr.bf16.gmra.mrb[0].mxu0 %v135
    %v1261 = vpop.f32.mrb[0].mxu0
    %v1262 = vadd.f32 %v696, %v1261
    %v1263 = vpop.f32.mrb[0].mxu0
    %v1264 = vadd.f32 %v698, %v1263
    %v1265 = vpop.f32.mrb[0].mxu0
    %v1266 = vadd.f32 %v700, %v1265
    %v1267 = vpop.f32.mrb[0].mxu0
    %v1268 = vadd.f32 %v702, %v1267
    %1269 = vmatprep.mubr.bf16.mxu0 0
    %1270 = vmatmul.mubr.bf16.gmra.mrb[0].mxu0 %v136
    %v1271 = vpop.f32.mrb[0].mxu0
    %v1272 = vadd.f32 %v706, %v1271
    %v1273 = vpop.f32.mrb[0].mxu0
    %v1274 = vadd.f32 %v708, %v1273
    %v1275 = vpop.f32.mrb[0].mxu0
    %v1276 = vadd.f32 %v710, %v1275
    %v1277 = vpop.f32.mrb[0].mxu0
    %v1278 = vadd.f32 %v712, %v1277
    %1279 = vmatprep.mubr.bf16.mxu0 0
    %1280 = vmatmul.mubr.bf16.gmra.mrb[0].mxu0 %v137
    %v1281 = vpop.f32.mrb[0].mxu0
    %v1282 = vadd.f32 %v716, %v1281
    %v1283 = vpop.f32.mrb[0].mxu0
    %v1284 = vadd.f32 %v718, %v1283
    %v1285 = vpop.f32.mrb[0].mxu0
    %v1286 = vadd.f32 %v720, %v1285
    %v1287 = vpop.f32.mrb[0].mxu0
    %v1288 = vadd.f32 %v722, %v1287
    %1289 = vmatprep.mubr.bf16.mxu0 0
    %1290 = vmatmul.mubr.bf16.gmra.mrb[0].mxu0 %v138
    %v1291 = vpop.f32.mrb[0].mxu0
    %v1292 = vadd.f32 %v726, %v1291
    %v1293 = vpop.f32.mrb[0].mxu0
    %v1294 = vadd.f32 %v728, %v1293
    %v1295 = vpop.f32.mrb[0].mxu0
    %v1296 = vadd.f32 %v730, %v1295
    %v1297 = vpop.f32.mrb[0].mxu0
    %v1298 = vadd.f32 %v732, %v1297
    %1299 = vmatprep.mubr.bf16.mxu0 0
    %1300 = vmatmul.mubr.bf16.gmra.mrb[0].mxu0 %v139
    %v1301 = vpop.f32.mrb[0].mxu0
    %v1302 = vadd.f32 %v736, %v1301
    %v1303 = vpop.f32.mrb[0].mxu0
    %v1304 = vadd.f32 %v738, %v1303
    %v1305 = vpop.f32.mrb[0].mxu0
    %v1306 = vadd.f32 %v740, %v1305
    %v1307 = vpop.f32.mrb[0].mxu0
    %v1308 = vadd.f32 %v742, %v1307
    %1309 = vmatprep.mubr.bf16.mxu0 0
    %1310 = vmatmul.mubr.bf16.gmra.mrb[0].mxu0 %v140
    %v1311 = vpop.f32.mrb[0].mxu0
    %v1312 = vadd.f32 %v746, %v1311
    %v1313 = vpop.f32.mrb[0].mxu0
    %v1314 = vadd.f32 %v748, %v1313
    %v1315 = vpop.f32.mrb[0].mxu0
    %v1316 = vadd.f32 %v750, %v1315
    %v1317 = vpop.f32.mrb[0].mxu0
    %v1318 = vadd.f32 %v752, %v1317
    %1319 = vmatprep.mubr.bf16.mxu0 0
    %1320 = vmatmul.mubr.bf16.gmra.mrb[0].mxu0 %v141
    %v1321 = vpop.f32.mrb[0].mxu0
    %v1322 = vadd.f32 %v756, %v1321
    %v1323 = vpop.f32.mrb[0].mxu0
    %v1324 = vadd.f32 %v758, %v1323
    %v1325 = vpop.f32.mrb[0].mxu0
    %v1326 = vadd.f32 %v760, %v1325
    %v1327 = vpop.f32.mrb[0].mxu0
    %v1328 = vadd.f32 %v762, %v1327
    %1329 = vmatprep.mubr.bf16.mxu0 0
    %1330 = vmatmul.mubr.bf16.gmra.mrb[0].mxu0 %v142
    %v1331 = vpop.f32.mrb[0].mxu0
    %v1332 = vadd.f32 %v766, %v1331
    %v1333 = vpop.f32.mrb[0].mxu0
    %v1334 = vadd.f32 %v768, %v1333
    %v1335 = vpop.f32.mrb[0].mxu0
    %v1336 = vadd.f32 %v770, %v1335
    %v1337 = vpop.f32.mrb[0].mxu0
    %v1338 = vadd.f32 %v772, %v1337
    %1339 = vdwg.mxu0
    %v1340 = vmul.f32 %v969, %v969
    %v1341 = vmul.f32 %v971, %v971
    %v1342 = vmul.f32 %v973, %v973
    %v1343 = vmul.f32 %v975, %v975
    %v1344 = vmul.f32 %v979, %v979
    %v1345 = vmul.f32 %v981, %v981
    %v1346 = vmul.f32 %v983, %v983
    %v1347 = vmul.f32 %v985, %v985
    %v1348 = vmul.f32 %v989, %v989
    %v1349 = vmul.f32 %v991, %v991
    %v1350 = vmul.f32 %v993, %v993
    %v1351 = vmul.f32 %v995, %v995
    %v1352 = vmul.f32 %v999, %v999
    %v1353 = vmul.f32 %v1001, %v1001
    %v1354 = vmul.f32 %v1003, %v1003
    %v1355 = vmul.f32 %v1005, %v1005
    %v1356 = vmul.f32 %v1009, %v1009
    %v1357 = vmul.f32 %v1011, %v1011
    %v1358 = vmul.f32 %v1013, %v1013
    %v1359 = vmul.f32 %v1015, %v1015
    %v1360 = vmul.f32 %v1019, %v1019
    %v1361 = vmul.f32 %v1021, %v1021
    %v1362 = vmul.f32 %v1023, %v1023
    %v1363 = vmul.f32 %v1025, %v1025
    %v1364 = vmul.f32 %v1029, %v1029
    %v1365 = vmul.f32 %v1031, %v1031
    %v1366 = vmul.f32 %v1033, %v1033
    %v1367 = vmul.f32 %v1035, %v1035
    %v1368 = vmul.f32 %v1039, %v1039
    %v1369 = vmul.f32 %v1041, %v1041
    %v1370 = vmul.f32 %v1043, %v1043
    %v1371 = vmul.f32 %v1045, %v1045
    %v1372 = vmul.f32 %v1049, %v1049
    %v1373 = vmul.f32 %v1051, %v1051
    %v1374 = vmul.f32 %v1053, %v1053
    %v1375 = vmul.f32 %v1055, %v1055
    %v1376 = vmul.f32 %v1059, %v1059
    %v1377 = vmul.f32 %v1061, %v1061
    %v1378 = vmul.f32 %v1063, %v1063
    %v1379 = vmul.f32 %v1065, %v1065
    %v1380 = vmul.f32 %v1069, %v1069
    %v1381 = vmul.f32 %v1071, %v1071
    %v1382 = vmul.f32 %v1073, %v1073
    %v1383 = vmul.f32 %v1075, %v1075
    %v1384 = vmul.f32 %v1079, %v1079
    %v1385 = vmul.f32 %v1081, %v1081
    %v1386 = vmul.f32 %v1083, %v1083
    %v1387 = vmul.f32 %v1085, %v1085
    %v1388 = vmul.f32 %v1089, %v1089
    %v1389 = vmul.f32 %v1091, %v1091
    %v1390 = vmul.f32 %v1093, %v1093
    %v1391 = vmul.f32 %v1095, %v1095
    %v1392 = vmul.f32 %v1099, %v1099
    %v1393 = vmul.f32 %v1101, %v1101
    %v1394 = vmul.f32 %v1103, %v1103
    %v1395 = vmul.f32 %v1105, %v1105
    %v1396 = vmul.f32 %v1109, %v1109
    %v1397 = vmul.f32 %v1111, %v1111
    %v1398 = vmul.f32 %v1113, %v1113
    %v1399 = vmul.f32 %v1115, %v1115
    %v1400 = vmul.f32 %v1119, %v1119
    %v1401 = vmul.f32 %v1121, %v1121
    %v1402 = vmul.f32 %v1123, %v1123
    %v1403 = vmul.f32 %v1125, %v1125
    %v1404 = vmul.f32 %v1129, %v1129
    %v1405 = vmul.f32 %v1131, %v1131
    %v1406 = vmul.f32 %v1133, %v1133
    %v1407 = vmul.f32 %v1135, %v1135
    %v1408 = vmul.f32 %v1172, %v1172
    %v1409 = vmul.f32 %v1174, %v1174
    %v1410 = vmul.f32 %v1176, %v1176
    %v1411 = vmul.f32 %v1178, %v1178
    %v1412 = vmul.f32 %v1182, %v1182
    %v1413 = vmul.f32 %v1184, %v1184
    %v1414 = vmul.f32 %v1186, %v1186
    %v1415 = vmul.f32 %v1188, %v1188
    %v1416 = vmul.f32 %v1192, %v1192
    %v1417 = vmul.f32 %v1194, %v1194
    %v1418 = vmul.f32 %v1196, %v1196
    %v1419 = vmul.f32 %v1198, %v1198
    %v1420 = vmul.f32 %v1202, %v1202
    %v1421 = vmul.f32 %v1204, %v1204
    %v1422 = vmul.f32 %v1206, %v1206
    %v1423 = vmul.f32 %v1208, %v1208
    %v1424 = vmul.f32 %v1212, %v1212
    %v1425 = vmul.f32 %v1214, %v1214
    %v1426 = vmul.f32 %v1216, %v1216
    %v1427 = vmul.f32 %v1218, %v1218
    %v1428 = vmul.f32 %v1222, %v1222
    %v1429 = vmul.f32 %v1224, %v1224
    %v1430 = vmul.f32 %v1226, %v1226
    %v1431 = vmul.f32 %v1228, %v1228
    %v1432 = vmul.f32 %v1232, %v1232
    %v1433 = vmul.f32 %v1234, %v1234
    %v1434 = vmul.f32 %v1236, %v1236
    %v1435 = vmul.f32 %v1238, %v1238
    %v1436 = vmul.f32 %v1242, %v1242
    %v1437 = vmul.f32 %v1244, %v1244
    %v1438 = vmul.f32 %v1246, %v1246
    %v1439 = vmul.f32 %v1248, %v1248
    %v1440 = vmul.f32 %v1252, %v1252
    %v1441 = vmul.f32 %v1254, %v1254
    %v1442 = vmul.f32 %v1256, %v1256
    %v1443 = vmul.f32 %v1258, %v1258
    %v1444 = vmul.f32 %v1262, %v1262
    %v1445 = vmul.f32 %v1264, %v1264
    %v1446 = vmul.f32 %v1266, %v1266
    %v1447 = vmul.f32 %v1268, %v1268
    %v1448 = vmul.f32 %v1272, %v1272
    %v1449 = vmul.f32 %v1274, %v1274
    %v1450 = vmul.f32 %v1276, %v1276
    %v1451 = vmul.f32 %v1278, %v1278
    %v1452 = vmul.f32 %v1282, %v1282
    %v1453 = vmul.f32 %v1284, %v1284
    %v1454 = vmul.f32 %v1286, %v1286
    %v1455 = vmul.f32 %v1288, %v1288
    %v1456 = vmul.f32 %v1292, %v1292
    %v1457 = vmul.f32 %v1294, %v1294
    %v1458 = vmul.f32 %v1296, %v1296
    %v1459 = vmul.f32 %v1298, %v1298
    %v1460 = vmul.f32 %v1302, %v1302
    %v1461 = vmul.f32 %v1304, %v1304
    %v1462 = vmul.f32 %v1306, %v1306
    %v1463 = vmul.f32 %v1308, %v1308
    %v1464 = vmul.f32 %v1312, %v1312
    %v1465 = vmul.f32 %v1314, %v1314
    %v1466 = vmul.f32 %v1316, %v1316
    %v1467 = vmul.f32 %v1318, %v1318
    %v1468 = vmul.f32 %v1322, %v1322
    %v1469 = vmul.f32 %v1324, %v1324
    %v1470 = vmul.f32 %v1326, %v1326
    %v1471 = vmul.f32 %v1328, %v1328
    %v1472 = vmul.f32 %v1332, %v1332
    %v1473 = vmul.f32 %v1334, %v1334
    %v1474 = vmul.f32 %v1336, %v1336
    %v1475 = vmul.f32 %v1338, %v1338
    %v1476 = vadd.f32 %v1340, %v1408
    %v1477 = vadd.f32 %v1341, %v1409
    %v1478 = vadd.f32 %v1342, %v1410
    %v1479 = vadd.f32 %v1343, %v1411
    %v1480 = vadd.f32 %v1344, %v1412
    %v1481 = vadd.f32 %v1345, %v1413
    %v1482 = vadd.f32 %v1346, %v1414
    %v1483 = vadd.f32 %v1347, %v1415
    %v1484 = vadd.f32 %v1348, %v1416
    %v1485 = vadd.f32 %v1349, %v1417
    %v1486 = vadd.f32 %v1350, %v1418
    %v1487 = vadd.f32 %v1351, %v1419
    %v1488 = vadd.f32 %v1352, %v1420
    %v1489 = vadd.f32 %v1353, %v1421
    %v1490 = vadd.f32 %v1354, %v1422
    %v1491 = vadd.f32 %v1355, %v1423
    %v1492 = vadd.f32 %v1356, %v1424
    %v1493 = vadd.f32 %v1357, %v1425
    %v1494 = vadd.f32 %v1358, %v1426
    %v1495 = vadd.f32 %v1359, %v1427
    %v1496 = vadd.f32 %v1360, %v1428
    %v1497 = vadd.f32 %v1361, %v1429
    %v1498 = vadd.f32 %v1362, %v1430
    %v1499 = vadd.f32 %v1363, %v1431
    %v1500 = vadd.f32 %v1364, %v1432
    %v1501 = vadd.f32 %v1365, %v1433
    %v1502 = vadd.f32 %v1366, %v1434
    %v1503 = vadd.f32 %v1367, %v1435
    %v1504 = vadd.f32 %v1368, %v1436
    %v1505 = vadd.f32 %v1369, %v1437
    %v1506 = vadd.f32 %v1370, %v1438
    %v1507 = vadd.f32 %v1371, %v1439
    %v1508 = vadd.f32 %v1372, %v1440
    %v1509 = vadd.f32 %v1373, %v1441
    %v1510 = vadd.f32 %v1374, %v1442
    %v1511 = vadd.f32 %v1375, %v1443
    %v1512 = vadd.f32 %v1376, %v1444
    %v1513 = vadd.f32 %v1377, %v1445
    %v1514 = vadd.f32 %v1378, %v1446
    %v1515 = vadd.f32 %v1379, %v1447
    %v1516 = vadd.f32 %v1380, %v1448
    %v1517 = vadd.f32 %v1381, %v1449
    %v1518 = vadd.f32 %v1382, %v1450
    %v1519 = vadd.f32 %v1383, %v1451
    %v1520 = vadd.f32 %v1384, %v1452
    %v1521 = vadd.f32 %v1385, %v1453
    %v1522 = vadd.f32 %v1386, %v1454
    %v1523 = vadd.f32 %v1387, %v1455
    %v1524 = vadd.f32 %v1388, %v1456
    %v1525 = vadd.f32 %v1389, %v1457
    %v1526 = vadd.f32 %v1390, %v1458
    %v1527 = vadd.f32 %v1391, %v1459
    %v1528 = vadd.f32 %v1392, %v1460
    %v1529 = vadd.f32 %v1393, %v1461
    %v1530 = vadd.f32 %v1394, %v1462
    %v1531 = vadd.f32 %v1395, %v1463
    %v1532 = vadd.f32 %v1396, %v1464
    %v1533 = vadd.f32 %v1397, %v1465
    %v1534 = vadd.f32 %v1398, %v1466
    %v1535 = vadd.f32 %v1399, %v1467
    %v1536 = vadd.f32 %v1400, %v1468
    %v1537 = vadd.f32 %v1401, %v1469
    %v1538 = vadd.f32 %v1402, %v1470
    %v1539 = vadd.f32 %v1403, %v1471
    %v1540 = vadd.f32 %v1404, %v1472
    %v1541 = vadd.f32 %v1405, %v1473
    %v1542 = vadd.f32 %v1406, %v1474
    %v1543 = vadd.f32 %v1407, %v1475
    %v1544 = vpack.c.bf16 %v1478, %v1476
    %v1545 = vpack.c.bf16 %v1479, %v1477
    %v1546 = vpack.c.bf16 %v1482, %v1480
    %v1547 = vpack.c.bf16 %v1483, %v1481
    %v1548 = vpack.c.bf16 %v1486, %v1484
    %v1549 = vpack.c.bf16 %v1487, %v1485
    %v1550 = vpack.c.bf16 %v1490, %v1488
    %v1551 = vpack.c.bf16 %v1491, %v1489
    %v1552 = vpack.c.bf16 %v1494, %v1492
    %v1553 = vpack.c.bf16 %v1495, %v1493
    %v1554 = vpack.c.bf16 %v1498, %v1496
    %v1555 = vpack.c.bf16 %v1499, %v1497
    %v1556 = vpack.c.bf16 %v1502, %v1500
    %v1557 = vpack.c.bf16 %v1503, %v1501
    %v1558 = vpack.c.bf16 %v1506, %v1504
    %v1559 = vpack.c.bf16 %v1507, %v1505
    %v1560 = vpack.c.bf16 %v1510, %v1508
    %v1561 = vpack.c.bf16 %v1511, %v1509
    %v1562 = vpack.c.bf16 %v1514, %v1512
    %v1563 = vpack.c.bf16 %v1515, %v1513
    %v1564 = vpack.c.bf16 %v1518, %v1516
    %v1565 = vpack.c.bf16 %v1519, %v1517
    %v1566 = vpack.c.bf16 %v1522, %v1520
    %v1567 = vpack.c.bf16 %v1523, %v1521
    %v1568 = vpack.c.bf16 %v1526, %v1524
    %v1569 = vpack.c.bf16 %v1527, %v1525
    %v1570 = vpack.c.bf16 %v1530, %v1528
    %v1571 = vpack.c.bf16 %v1531, %v1529
    %v1572 = vpack.c.bf16 %v1534, %v1532
    %v1573 = vpack.c.bf16 %v1535, %v1533
    %v1574 = vpack.c.bf16 %v1538, %v1536
    %v1575 = vpack.c.bf16 %v1539, %v1537
    %v1576 = vpack.c.bf16 %v1542, %v1540
    %v1577 = vpack.c.bf16 %v1543, %v1541
    %v1578 = vld [vmem:[#allocation8] sm:$0xf]
    %v1579 = vld [vmem:[#allocation8 + $0x4] sm:$0xf]
    %v1580 = vld [vmem:[#allocation8 + $0x8] sm:$0xf]
    %v1581 = vld [vmem:[#allocation8 + $0xc] sm:$0xf]
    %v1582 = vld [vmem:[#allocation8 + $0x10] sm:$0xf]
    %v1583 = vld [vmem:[#allocation8 + $0x14] sm:$0xf]
    %v1584 = vld [vmem:[#allocation8 + $0x18] sm:$0xf]
    %v1585 = vld [vmem:[#allocation8 + $0x1c] sm:$0xf]
    %v1586 = vld [vmem:[#allocation8 + $0x20] sm:$0xf]
    %v1587 = vld [vmem:[#allocation8 + $0x24] sm:$0xf]
    %v1588 = vld [vmem:[#allocation8 + $0x28] sm:$0xf]
    %v1589 = vld [vmem:[#allocation8 + $0x2c] sm:$0xf]
    %v1590 = vld [vmem:[#allocation8 + $0x30] sm:$0xf]
    %v1591 = vld [vmem:[#allocation8 + $0x34] sm:$0xf]
    %v1592 = vld [vmem:[#allocation8 + $0x38] sm:$0xf]
    %v1593 = vld [vmem:[#allocation8 + $0x3c] sm:$0xf]
    %v1594 = vld [vmem:[#allocation8 + $0x40] sm:$0xf]
    %v1595 = vld [vmem:[#allocation8 + $0x44] sm:$0xf]
    %v1596 = vld [vmem:[#allocation8 + $0x48] sm:$0xf]
    %v1597 = vld [vmem:[#allocation8 + $0x4c] sm:$0xf]
    %v1598 = vld [vmem:[#allocation8 + $0x50] sm:$0xf]
    %v1599 = vld [vmem:[#allocation8 + $0x54] sm:$0xf]
    %v1600 = vld [vmem:[#allocation8 + $0x58] sm:$0xf]
    %v1601 = vld [vmem:[#allocation8 + $0x5c] sm:$0xf]
    %v1602 = vld [vmem:[#allocation8 + $0x60] sm:$0xf]
    %v1603 = vld [vmem:[#allocation8 + $0x64] sm:$0xf]
    %v1604 = vld [vmem:[#allocation8 + $0x68] sm:$0xf]
    %v1605 = vld [vmem:[#allocation8 + $0x6c] sm:$0xf]
    %v1606 = vld [vmem:[#allocation8 + $0x70] sm:$0xf]
    %v1607 = vld [vmem:[#allocation8 + $0x74] sm:$0xf]
    %v1608 = vld [vmem:[#allocation8 + $0x78] sm:$0xf]
    %v1609 = vld [vmem:[#allocation8 + $0x7c] sm:$0xf]
    %v1642 = vunpack.c.l.b16 %v1578
    %v1643 = vunpack.c.l.b16 %v1579
    %v1644 = vunpack.c.l.b16 %v1580
    %v1645 = vunpack.c.l.b16 %v1581
    %v1646 = vunpack.c.l.b16 %v1582
    %v1647 = vunpack.c.l.b16 %v1583
    %v1648 = vunpack.c.l.b16 %v1584
    %v1649 = vunpack.c.l.b16 %v1585
    %v1650 = vunpack.c.l.b16 %v1586
    %v1651 = vunpack.c.l.b16 %v1587
    %v1652 = vunpack.c.l.b16 %v1588
    %v1653 = vunpack.c.l.b16 %v1589
    %v1654 = vunpack.c.l.b16 %v1590
    %v1655 = vunpack.c.l.b16 %v1591
    %v1656 = vunpack.c.l.b16 %v1592
    %v1657 = vunpack.c.l.b16 %v1593
    %v1658 = vunpack.c.l.b16 %v1594
    %v1659 = vunpack.c.l.b16 %v1595
    %v1660 = vunpack.c.l.b16 %v1596
    %v1661 = vunpack.c.l.b16 %v1597
    %v1662 = vunpack.c.l.b16 %v1598
    %v1663 = vunpack.c.l.b16 %v1599
    %v1664 = vunpack.c.l.b16 %v1600
    %v1665 = vunpack.c.l.b16 %v1601
    %v1666 = vunpack.c.l.b16 %v1602
    %v1667 = vunpack.c.l.b16 %v1603
    %v1668 = vunpack.c.l.b16 %v1604
    %v1669 = vunpack.c.l.b16 %v1605
    %v1670 = vunpack.c.l.b16 %v1606
    %v1671 = vunpack.c.l.b16 %v1607
    %v1672 = vunpack.c.l.b16 %v1608
    %v1673 = vunpack.c.l.b16 %v1609
    %v1674 = vpack.c.b16 %v1643, %v1642
    %v1675 = vpack.c.b16 %v1645, %v1644
    %v1676 = vpack.c.b16 %v1647, %v1646
    %v1677 = vpack.c.b16 %v1649, %v1648
    %v1678 = vpack.c.b16 %v1651, %v1650
    %v1679 = vpack.c.b16 %v1653, %v1652
    %v1680 = vpack.c.b16 %v1655, %v1654
    %v1681 = vpack.c.b16 %v1657, %v1656
    %v1682 = vpack.c.b16 %v1659, %v1658
    %v1683 = vpack.c.b16 %v1661, %v1660
    %v1684 = vpack.c.b16 %v1663, %v1662
    %v1685 = vpack.c.b16 %v1665, %v1664
    %v1686 = vpack.c.b16 %v1667, %v1666
    %v1687 = vpack.c.b16 %v1669, %v1668
    %v1688 = vpack.c.b16 %v1671, %v1670
    %v1689 = vpack.c.b16 %v1673, %v1672
    %1706 = vmatprep.subr.bf16.mxu0 0
    %1707 = vmatpush1.bf16.msra.mxu0 %v1674
    %1708 = vmatprep.subr.bf16.mxu0 0
    %1709 = vmatpush1.bf16.msra.mxu0 %v1675
    %1710 = vmatprep.subr.bf16.mxu0 0
    %1711 = vmatpush1.bf16.msra.mxu0 %v1676
    %1712 = vmatprep.subr.bf16.mxu0 0
    %1713 = vmatpush1.bf16.msra.mxu0 %v1677
    %1714 = vmatprep.subr.bf16.mxu0 0
    %1715 = vmatpush1.bf16.msra.mxu0 %v1678
    %1716 = vmatprep.subr.bf16.mxu0 0
    %1717 = vmatpush1.bf16.msra.mxu0 %v1679
    %1718 = vmatprep.subr.bf16.mxu0 0
    %1719 = vmatpush1.bf16.msra.mxu0 %v1680
    %1720 = vmatprep.subr.bf16.mxu0 0
    %1721 = vmatpush1.bf16.msra.mxu0 %v1681
    %1722 = vmatprep.subr.bf16.mxu0 0
    %1723 = vmatpush1.bf16.msra.mxu0 %v1682
    %1724 = vmatprep.subr.bf16.mxu0 0
    %1725 = vmatpush1.bf16.msra.mxu0 %v1683
    %1726 = vmatprep.subr.bf16.mxu0 0
    %1727 = vmatpush1.bf16.msra.mxu0 %v1684
    %1728 = vmatprep.subr.bf16.mxu0 0
    %1729 = vmatpush1.bf16.msra.mxu0 %v1685
    %1730 = vmatprep.subr.bf16.mxu0 0
    %1731 = vmatpush1.bf16.msra.mxu0 %v1686
    %1732 = vmatprep.subr.bf16.mxu0 0
    %1733 = vmatpush1.bf16.msra.mxu0 %v1687
    %1734 = vmatprep.subr.bf16.mxu0 0
    %1735 = vmatpush1.bf16.msra.mxu0 %v1688
    %1736 = vmatprep.subr.bf16.mxu0 0
    %1737 = vmatpush1.bf16.msra.mxu0 %v1689
    %1738 = vmatprep.mubr.bf16.mxu0 %v1545
    %1739 = vmatmul.mubr.bf16.gmra.mrb[0].mxu0 %v1544
    %v1740 = vpop.f32.mrb[0].mxu0
    %v1741 = vadd.f32 0.0, %v1740
    %v1742 = vpop.f32.mrb[0].mxu0
    %v1743 = vpop.f32.mrb[0].mxu0
    %v1744 = vadd.f32 0.0, %v1743
    %v1745 = vpop.f32.mrb[0].mxu0
    %1746 = vmatprep.mubr.bf16.mxu0 %v1547
    %1747 = vmatmul.mubr.bf16.gmra.mrb[0].mxu0 %v1546
    %v1748 = vpop.f32.mrb[0].mxu0
    %v1749 = vadd.f32 0.0, %v1748
    %v1750 = vpop.f32.mrb[0].mxu0
    %v1751 = vpop.f32.mrb[0].mxu0
    %v1752 = vadd.f32 0.0, %v1751
    %v1753 = vpop.f32.mrb[0].mxu0
    %1754 = vmatprep.mubr.bf16.mxu0 %v1549
    %1755 = vmatmul.mubr.bf16.gmra.mrb[0].mxu0 %v1548
    %v1756 = vpop.f32.mrb[0].mxu0
    %v1757 = vadd.f32 0.0, %v1756
    %v1758 = vpop.f32.mrb[0].mxu0
    %v1759 = vpop.f32.mrb[0].mxu0
    %v1760 = vadd.f32 0.0, %v1759
    %v1761 = vpop.f32.mrb[0].mxu0
    %1762 = vmatprep.mubr.bf16.mxu0 %v1551
    %1763 = vmatmul.mubr.bf16.gmra.mrb[0].mxu0 %v1550
    %v1764 = vpop.f32.mrb[0].mxu0
    %v1765 = vadd.f32 0.0, %v1764
    %v1766 = vpop.f32.mrb[0].mxu0
    %v1767 = vpop.f32.mrb[0].mxu0
    %v1768 = vadd.f32 0.0, %v1767
    %v1769 = vpop.f32.mrb[0].mxu0
    %1770 = vmatprep.mubr.bf16.mxu0 %v1553
    %1771 = vmatmul.mubr.bf16.gmra.mrb[0].mxu0 %v1552
    %v1772 = vpop.f32.mrb[0].mxu0
    %v1773 = vadd.f32 0.0, %v1772
    %v1774 = vpop.f32.mrb[0].mxu0
    %v1775 = vpop.f32.mrb[0].mxu0
    %v1776 = vadd.f32 0.0, %v1775
    %v1777 = vpop.f32.mrb[0].mxu0
    %1778 = vmatprep.mubr.bf16.mxu0 %v1555
    %1779 = vmatmul.mubr.bf16.gmra.mrb[0].mxu0 %v1554
    %v1780 = vpop.f32.mrb[0].mxu0
    %v1781 = vadd.f32 0.0, %v1780
    %v1782 = vpop.f32.mrb[0].mxu0
    %v1783 = vpop.f32.mrb[0].mxu0
    %v1784 = vadd.f32 0.0, %v1783
    %v1785 = vpop.f32.mrb[0].mxu0
    %1786 = vmatprep.mubr.bf16.mxu0 %v1557
    %1787 = vmatmul.mubr.bf16.gmra.mrb[0].mxu0 %v1556
    %v1788 = vpop.f32.mrb[0].mxu0
    %v1789 = vadd.f32 0.0, %v1788
    %v1790 = vpop.f32.mrb[0].mxu0
    %v1791 = vpop.f32.mrb[0].mxu0
    %v1792 = vadd.f32 0.0, %v1791
    %v1793 = vpop.f32.mrb[0].mxu0
    %1794 = vmatprep.mubr.bf16.mxu0 %v1559
    %1795 = vmatmul.mubr.bf16.gmra.mrb[0].mxu0 %v1558
    %v1796 = vpop.f32.mrb[0].mxu0
    %v1797 = vadd.f32 0.0, %v1796
    %v1798 = vpop.f32.mrb[0].mxu0
    %v1799 = vpop.f32.mrb[0].mxu0
    %v1800 = vadd.f32 0.0, %v1799
    %v1801 = vpop.f32.mrb[0].mxu0
    %1802 = vmatprep.mubr.bf16.mxu0 %v1561
    %1803 = vmatmul.mubr.bf16.gmra.mrb[0].mxu0 %v1560
    %v1804 = vpop.f32.mrb[0].mxu0
    %v1805 = vadd.f32 0.0, %v1804
    %v1806 = vpop.f32.mrb[0].mxu0
    %v1807 = vpop.f32.mrb[0].mxu0
    %v1808 = vadd.f32 0.0, %v1807
    %v1809 = vpop.f32.mrb[0].mxu0
    %1810 = vmatprep.mubr.bf16.mxu0 %v1563
    %1811 = vmatmul.mubr.bf16.gmra.mrb[0].mxu0 %v1562
    %v1812 = vpop.f32.mrb[0].mxu0
    %v1813 = vadd.f32 0.0, %v1812
    %v1814 = vpop.f32.mrb[0].mxu0
    %v1815 = vpop.f32.mrb[0].mxu0
    %v1816 = vadd.f32 0.0, %v1815
    %v1817 = vpop.f32.mrb[0].mxu0
    %1818 = vmatprep.mubr.bf16.mxu0 %v1565
    %1819 = vmatmul.mubr.bf16.gmra.mrb[0].mxu0 %v1564
    %v1820 = vpop.f32.mrb[0].mxu0
    %v1821 = vadd.f32 0.0, %v1820
    %v1822 = vpop.f32.mrb[0].mxu0
    %v1823 = vpop.f32.mrb[0].mxu0
    %v1824 = vadd.f32 0.0, %v1823
    %v1825 = vpop.f32.mrb[0].mxu0
    %1826 = vmatprep.mubr.bf16.mxu0 %v1567
    %1827 = vmatmul.mubr.bf16.gmra.mrb[0].mxu0 %v1566
    %v1828 = vpop.f32.mrb[0].mxu0
    %v1829 = vadd.f32 0.0, %v1828
    %v1830 = vpop.f32.mrb[0].mxu0
    %v1831 = vpop.f32.mrb[0].mxu0
    %v1832 = vadd.f32 0.0, %v1831
    %v1833 = vpop.f32.mrb[0].mxu0
    %1834 = vmatprep.mubr.bf16.mxu0 %v1569
    %1835 = vmatmul.mubr.bf16.gmra.mrb[0].mxu0 %v1568
    %v1836 = vpop.f32.mrb[0].mxu0
    %v1837 = vadd.f32 0.0, %v1836
    %v1838 = vpop.f32.mrb[0].mxu0
    %v1839 = vpop.f32.mrb[0].mxu0
    %v1840 = vadd.f32 0.0, %v1839
    %v1841 = vpop.f32.mrb[0].mxu0
    %1842 = vmatprep.mubr.bf16.mxu0 %v1571
    %1843 = vmatmul.mubr.bf16.gmra.mrb[0].mxu0 %v1570
    %v1844 = vpop.f32.mrb[0].mxu0
    %v1845 = vadd.f32 0.0, %v1844
    %v1846 = vpop.f32.mrb[0].mxu0
    %v1847 = vpop.f32.mrb[0].mxu0
    %v1848 = vadd.f32 0.0, %v1847
    %v1849 = vpop.f32.mrb[0].mxu0
    %1850 = vmatprep.mubr.bf16.mxu0 %v1573
    %1851 = vmatmul.mubr.bf16.gmra.mrb[0].mxu0 %v1572
    %v1852 = vpop.f32.mrb[0].mxu0
    %v1853 = vadd.f32 0.0, %v1852
    %v1854 = vpop.f32.mrb[0].mxu0
    %v1855 = vpop.f32.mrb[0].mxu0
    %v1856 = vadd.f32 0.0, %v1855
    %v1857 = vpop.f32.mrb[0].mxu0
    %1858 = vmatprep.mubr.bf16.mxu0 %v1575
    %1859 = vmatmul.mubr.bf16.gmra.mrb[0].mxu0 %v1574
    %v1860 = vpop.f32.mrb[0].mxu0
    %v1861 = vadd.f32 0.0, %v1860
    %v1862 = vpop.f32.mrb[0].mxu0
    %v1863 = vpop.f32.mrb[0].mxu0
    %v1864 = vadd.f32 0.0, %v1863
    %v1865 = vpop.f32.mrb[0].mxu0
    %1866 = vmatprep.mubr.bf16.mxu0 %v1577
    %1867 = vmatmul.mubr.bf16.gmra.mrb[0].mxu0 %v1576
    %v1868 = vpop.f32.mrb[0].mxu0
    %v1869 = vadd.f32 0.0, %v1868
    %v1870 = vpop.f32.mrb[0].mxu0
    %v1871 = vpop.f32.mrb[0].mxu0
    %v1872 = vadd.f32 0.0, %v1871
    %v1873 = vpop.f32.mrb[0].mxu0
    %1874 = vdwg.mxu0
    %v1875 = vmax.f32 %v1741, 1e-10
    %v1876 = vmax.f32 %v1744, 1e-10
    %v1877 = vmax.f32 %v1749, 1e-10
    %v1878 = vmax.f32 %v1752, 1e-10
    %v1879 = vmax.f32 %v1757, 1e-10
    %v1880 = vmax.f32 %v1760, 1e-10
    %v1881 = vmax.f32 %v1765, 1e-10
    %v1882 = vmax.f32 %v1768, 1e-10
    %v1883 = vmax.f32 %v1773, 1e-10
    %v1884 = vmax.f32 %v1776, 1e-10
    %v1885 = vmax.f32 %v1781, 1e-10
    %v1886 = vmax.f32 %v1784, 1e-10
    %v1887 = vmax.f32 %v1789, 1e-10
    %v1888 = vmax.f32 %v1792, 1e-10
    %v1889 = vmax.f32 %v1797, 1e-10
    %v1890 = vmax.f32 %v1800, 1e-10
    %v1891 = vmax.f32 %v1805, 1e-10
    %v1892 = vmax.f32 %v1808, 1e-10
    %v1893 = vmax.f32 %v1813, 1e-10
    %v1894 = vmax.f32 %v1816, 1e-10
    %v1895 = vmax.f32 %v1821, 1e-10
    %v1896 = vmax.f32 %v1824, 1e-10
    %v1897 = vmax.f32 %v1829, 1e-10
    %v1898 = vmax.f32 %v1832, 1e-10
    %v1899 = vmax.f32 %v1837, 1e-10
    %v1900 = vmax.f32 %v1840, 1e-10
    %v1901 = vmax.f32 %v1845, 1e-10
    %v1902 = vmax.f32 %v1848, 1e-10
    %v1903 = vmax.f32 %v1853, 1e-10
    %v1904 = vmax.f32 %v1856, 1e-10
    %v1905 = vmax.f32 %v1861, 1e-10
    %v1906 = vmax.f32 %v1864, 1e-10
    %v1907 = vmax.f32 %v1869, 1e-10
    %v1908 = vmax.f32 %v1872, 1e-10
    %v1909 = vlog2.pop %v1875
    %v1910 = vmul.f32 %v1909, 0.6931472
    %v1911 = vlog2.pop %v1876
    %v1912 = vmul.f32 %v1911, 0.6931472
    %v1913 = vlog2.pop %v1877
    %v1914 = vmul.f32 %v1913, 0.6931472
    %v1915 = vlog2.pop %v1878
    %v1916 = vmul.f32 %v1915, 0.6931472
    %v1917 = vlog2.pop %v1879
    %v1918 = vmul.f32 %v1917, 0.6931472
    %v1919 = vlog2.pop %v1880
    %v1920 = vmul.f32 %v1919, 0.6931472
    %v1921 = vlog2.pop %v1881
    %v1922 = vmul.f32 %v1921, 0.6931472
    %v1923 = vlog2.pop %v1882
    %v1924 = vmul.f32 %v1923, 0.6931472
    %v1925 = vlog2.pop %v1883
    %v1926 = vmul.f32 %v1925, 0.6931472
    %v1927 = vlog2.pop %v1884
    %v1928 = vmul.f32 %v1927, 0.6931472
    %v1929 = vlog2.pop %v1885
    %v1930 = vmul.f32 %v1929, 0.6931472
    %v1931 = vlog2.pop %v1886
    %v1932 = vmul.f32 %v1931, 0.6931472
    %v1933 = vlog2.pop %v1887
    %v1934 = vmul.f32 %v1933, 0.6931472
    %v1935 = vlog2.pop %v1888
    %v1936 = vmul.f32 %v1935, 0.6931472
    %v1937 = vlog2.pop %v1889
    %v1938 = vmul.f32 %v1937, 0.6931472
    %v1939 = vlog2.pop %v1890
    %v1940 = vmul.f32 %v1939, 0.6931472
    %v1941 = vlog2.pop %v1891
    %v1942 = vmul.f32 %v1941, 0.6931472
    %v1943 = vlog2.pop %v1892
    %v1944 = vmul.f32 %v1943, 0.6931472
    %v1945 = vlog2.pop %v1893
    %v1946 = vmul.f32 %v1945, 0.6931472
    %v1947 = vlog2.pop %v1894
    %v1948 = vmul.f32 %v1947, 0.6931472
    %v1949 = vlog2.pop %v1895
    %v1950 = vmul.f32 %v1949, 0.6931472
    %v1951 = vlog2.pop %v1896
    %v1952 = vmul.f32 %v1951, 0.6931472
    %v1953 = vlog2.pop %v1897
    %v1954 = vmul.f32 %v1953, 0.6931472
    %v1955 = vlog2.pop %v1898
    %v1956 = vmul.f32 %v1955, 0.6931472
    %v1957 = vlog2.pop %v1899
    %v1958 = vmul.f32 %v1957, 0.6931472
    %v1959 = vlog2.pop %v1900
    %v1960 = vmul.f32 %v1959, 0.6931472
    %v1961 = vlog2.pop %v1901
    %v1962 = vmul.f32 %v1961, 0.6931472
    %v1963 = vlog2.pop %v1902
    %v1964 = vmul.f32 %v1963, 0.6931472
    %v1965 = vlog2.pop %v1903
    %v1966 = vmul.f32 %v1965, 0.6931472
    %v1967 = vlog2.pop %v1904
    %v1968 = vmul.f32 %v1967, 0.6931472
    %v1969 = vlog2.pop %v1905
    %v1970 = vmul.f32 %v1969, 0.6931472
    %v1971 = vlog2.pop %v1906
    %v1972 = vmul.f32 %v1971, 0.6931472
    %v1973 = vlog2.pop %v1907
    %v1974 = vmul.f32 %v1973, 0.6931472
    %v1975 = vlog2.pop %v1908
    %v1976 = vmul.f32 %v1975, 0.6931472
    %v1977 = vmul.f32 %v1910, 0.4342945
    %v1978 = vmul.f32 %v1912, 0.4342945
    %v1979 = vmul.f32 %v1914, 0.4342945
    %v1980 = vmul.f32 %v1916, 0.4342945
    %v1981 = vmul.f32 %v1918, 0.4342945
    %v1982 = vmul.f32 %v1920, 0.4342945
    %v1983 = vmul.f32 %v1922, 0.4342945
    %v1984 = vmul.f32 %v1924, 0.4342945
    %v1985 = vmul.f32 %v1926, 0.4342945
    %v1986 = vmul.f32 %v1928, 0.4342945
    %v1987 = vmul.f32 %v1930, 0.4342945
    %v1988 = vmul.f32 %v1932, 0.4342945
    %v1989 = vmul.f32 %v1934, 0.4342945
    %v1990 = vmul.f32 %v1936, 0.4342945
    %v1991 = vmul.f32 %v1938, 0.4342945
    %v1992 = vmul.f32 %v1940, 0.4342945
    %v1993 = vmul.f32 %v1942, 0.4342945
    %v1994 = vmul.f32 %v1944, 0.4342945
    %v1995 = vmul.f32 %v1946, 0.4342945
    %v1996 = vmul.f32 %v1948, 0.4342945
    %v1997 = vmul.f32 %v1950, 0.4342945
    %v1998 = vmul.f32 %v1952, 0.4342945
    %v1999 = vmul.f32 %v1954, 0.4342945
    %v2000 = vmul.f32 %v1956, 0.4342945
    %v2001 = vmul.f32 %v1958, 0.4342945
    %v2002 = vmul.f32 %v1960, 0.4342945
    %v2003 = vmul.f32 %v1962, 0.4342945
    %v2004 = vmul.f32 %v1964, 0.4342945
    %v2005 = vmul.f32 %v1966, 0.4342945
    %v2006 = vmul.f32 %v1968, 0.4342945
    %v2007 = vmul.f32 %v1970, 0.4342945
    %v2008 = vmul.f32 %v1972, 0.4342945
    %v2009 = vmul.f32 %v1974, 0.4342945
    %v2010 = vmul.f32 %v1976, 0.4342945
    %v2011 = vmul.f32 %v1977, 10.0
    %v2012 = vmul.f32 %v1978, 10.0
    %v2013 = vmul.f32 %v1979, 10.0
    %v2014 = vmul.f32 %v1980, 10.0
    %v2015 = vmul.f32 %v1981, 10.0
    %v2016 = vmul.f32 %v1982, 10.0
    %v2017 = vmul.f32 %v1983, 10.0
    %v2018 = vmul.f32 %v1984, 10.0
    %v2019 = vmul.f32 %v1985, 10.0
    %v2020 = vmul.f32 %v1986, 10.0
    %v2021 = vmul.f32 %v1987, 10.0
    %v2022 = vmul.f32 %v1988, 10.0
    %v2023 = vmul.f32 %v1989, 10.0
    %v2024 = vmul.f32 %v1990, 10.0
    %v2025 = vmul.f32 %v1991, 10.0
    %v2026 = vmul.f32 %v1992, 10.0
    %v2027 = vmul.f32 %v1993, 10.0
    %v2028 = vmul.f32 %v1994, 10.0
    %v2029 = vmul.f32 %v1995, 10.0
    %v2030 = vmul.f32 %v1996, 10.0
    %v2031 = vmul.f32 %v1997, 10.0
    %v2032 = vmul.f32 %v1998, 10.0
    %v2033 = vmul.f32 %v1999, 10.0
    %v2034 = vmul.f32 %v2000, 10.0
    %v2035 = vmul.f32 %v2001, 10.0
    %v2036 = vmul.f32 %v2002, 10.0
    %v2037 = vmul.f32 %v2003, 10.0
    %v2038 = vmul.f32 %v2004, 10.0
    %v2039 = vmul.f32 %v2005, 10.0
    %v2040 = vmul.f32 %v2006, 10.0
    %v2041 = vmul.f32 %v2007, 10.0
    %v2042 = vmul.f32 %v2008, 10.0
    %v2043 = vmul.f32 %v2009, 10.0
    %v2044 = vmul.f32 %v2010, 10.0
    %2045 = vmax.xlane.f32.xlu0 %v2011
    %v2046 = vpop.xlane.xlu0 %2045
    %2047 = vmax.xlane.f32.xlu0 %v2012
    %v2048 = vpop.xlane.xlu0 %2047
    %2049 = vmax.xlane.f32.xlu0 %v2013
    %v2050 = vpop.xlane.xlu0 %2049
    %2051 = vmax.xlane.f32.xlu0 %v2014
    %v2052 = vpop.xlane.xlu0 %2051
    %2053 = vmax.xlane.f32.xlu0 %v2015
    %v2054 = vpop.xlane.xlu0 %2053
    %2055 = vmax.xlane.f32.xlu0 %v2016
    %v2056 = vpop.xlane.xlu0 %2055
    %2057 = vmax.xlane.f32.xlu0 %v2017
    %v2058 = vpop.xlane.xlu0 %2057
    %2059 = vmax.xlane.f32.xlu0 %v2018
    %v2060 = vpop.xlane.xlu0 %2059
    %2061 = vmax.xlane.f32.xlu0 %v2019
    %v2062 = vpop.xlane.xlu0 %2061
    %2063 = vmax.xlane.f32.xlu0 %v2020
    %v2064 = vpop.xlane.xlu0 %2063
    %2065 = vmax.xlane.f32.xlu0 %v2021
    %v2066 = vpop.xlane.xlu0 %2065
    %2067 = vmax.xlane.f32.xlu0 %v2022
    %v2068 = vpop.xlane.xlu0 %2067
    %2069 = vmax.xlane.f32.xlu0 %v2023
    %v2070 = vpop.xlane.xlu0 %2069
    %2071 = vmax.xlane.f32.xlu0 %v2024
    %v2072 = vpop.xlane.xlu0 %2071
    %2073 = vmax.xlane.f32.xlu0 %v2025
    %v2074 = vpop.xlane.xlu0 %2073
    %2075 = vmax.xlane.f32.xlu0 %v2026
    %v2076 = vpop.xlane.xlu0 %2075
    %2077 = vmax.xlane.f32.xlu0 %v2027
    %v2078 = vpop.xlane.xlu0 %2077
    %2079 = vmax.xlane.f32.xlu0 %v2028
    %v2080 = vpop.xlane.xlu0 %2079
    %2081 = vmax.xlane.f32.xlu0 %v2029
    %v2082 = vpop.xlane.xlu0 %2081
    %2083 = vmax.xlane.f32.xlu0 %v2030
    %v2084 = vpop.xlane.xlu0 %2083
    %2085 = vmax.xlane.f32.xlu0 %v2031
    %v2086 = vpop.xlane.xlu0 %2085
    %2087 = vmax.xlane.f32.xlu0 %v2032
    %v2088 = vpop.xlane.xlu0 %2087
    %2089 = vmax.xlane.f32.xlu0 %v2033
    %v2090 = vpop.xlane.xlu0 %2089
    %2091 = vmax.xlane.f32.xlu0 %v2034
    %v2092 = vpop.xlane.xlu0 %2091
    %2093 = vmax.xlane.f32.xlu0 %v2035
    %v2094 = vpop.xlane.xlu0 %2093
    %2095 = vmax.xlane.f32.xlu0 %v2036
    %v2096 = vpop.xlane.xlu0 %2095
    %2097 = vmax.xlane.f32.xlu0 %v2037
    %v2098 = vpop.xlane.xlu0 %2097
    %2099 = vmax.xlane.f32.xlu0 %v2038
    %v2100 = vpop.xlane.xlu0 %2099
    %2101 = vmax.xlane.f32.xlu0 %v2039
    %v2102 = vpop.xlane.xlu0 %2101
    %2103 = vmax.xlane.f32.xlu0 %v2040
    %v2104 = vpop.xlane.xlu0 %2103
    %2105 = vmax.xlane.f32.xlu0 %v2041
    %v2106 = vpop.xlane.xlu0 %2105
    %2107 = vmax.xlane.f32.xlu0 %v2042
    %v2108 = vpop.xlane.xlu0 %2107
    %2109 = vmax.xlane.f32.xlu0 %v2043
    %v2110 = vpop.xlane.xlu0 %2109
    %2111 = vmax.xlane.f32.xlu0 %v2044
    %v2112 = vpop.xlane.xlu0 %2111
    %v2113 = vmax.f32 %v2046, %v2054
    %v2114 = vmax.f32 %v2050, %v2058
    %v2115 = vmax.f32 %v2113, %v2062
    %v2116 = vmax.f32 %v2114, %v2066
    %v2117 = vmax.f32 %v2115, %v2070
    %v2118 = vmax.f32 %v2116, %v2074
    %v2119 = vmax.f32 %v2117, %v2078
    %v2120 = vmax.f32 %v2118, %v2082
    %v2121 = vmax.f32 %v2119, %v2086
    %v2122 = vmax.f32 %v2120, %v2090
    %v2123 = vmax.f32 %v2121, %v2094
    %v2124 = vmax.f32 %v2122, %v2098
    %v2125 = vmax.f32 %v2123, %v2102
    %v2126 = vmax.f32 %v2124, %v2106
    %v2127 = vmax.f32 %v2125, %v2110
    %v2128 = vmax.f32 %v2127, %v2126
    %v2129 = vmax.f32 %v2048, %v2056
    %v2130 = vmax.f32 %v2052, %v2060
    %v2131 = vmax.f32 %v2129, %v2064
    %v2132 = vmax.f32 %v2130, %v2068
    %v2133 = vmax.f32 %v2131, %v2072
    %v2134 = vmax.f32 %v2132, %v2076
    %v2135 = vmax.f32 %v2133, %v2080
    %v2136 = vmax.f32 %v2134, %v2084
    %v2137 = vmax.f32 %v2135, %v2088
    %v2138 = vmax.f32 %v2136, %v2092
    %v2139 = vmax.f32 %v2137, %v2096
    %v2140 = vmax.f32 %v2138, %v2100
    %v2141 = vmax.f32 %v2139, %v2104
    %v2142 = vmax.f32 %v2140, %v2108
    %v2143 = vmax.f32 %v2141, %v2112
    %v2144 = vmax.f32 %v2143, %v2142
    %v2145 = vsub.f32 %v2128, 80.0
    %v2146 = vsub.f32 %v2144, 80.0
    %v2147 = vmax.f32 %v2011, %v2145
    %v2148 = vmax.f32 %v2012, %v2146
    %v2149 = vmax.f32 %v2013, %v2145
    %v2150 = vmax.f32 %v2014, %v2146
    %v2151 = vmax.f32 %v2015, %v2145
    %v2152 = vmax.f32 %v2016, %v2146
    %v2153 = vmax.f32 %v2017, %v2145
    %v2154 = vmax.f32 %v2018, %v2146
    %v2155 = vmax.f32 %v2019, %v2145
    %v2156 = vmax.f32 %v2020, %v2146
    %v2157 = vmax.f32 %v2021, %v2145
    %v2158 = vmax.f32 %v2022, %v2146
    %v2159 = vmax.f32 %v2023, %v2145
    %v2160 = vmax.f32 %v2024, %v2146
    %v2161 = vmax.f32 %v2025, %v2145
    %v2162 = vmax.f32 %v2026, %v2146
    %v2163 = vmax.f32 %v2027, %v2145
    %v2164 = vmax.f32 %v2028, %v2146
    %v2165 = vmax.f32 %v2029, %v2145
    %v2166 = vmax.f32 %v2030, %v2146
    %v2167 = vmax.f32 %v2031, %v2145
    %v2168 = vmax.f32 %v2032, %v2146
    %v2169 = vmax.f32 %v2033, %v2145
    %v2170 = vmax.f32 %v2034, %v2146
    %v2171 = vmax.f32 %v2035, %v2145
    %v2172 = vmax.f32 %v2036, %v2146
    %v2173 = vmax.f32 %v2037, %v2145
    %v2174 = vmax.f32 %v2038, %v2146
    %v2175 = vmax.f32 %v2039, %v2145
    %v2176 = vmax.f32 %v2040, %v2146
    %v2177 = vmax.f32 %v2041, %v2145
    %v2178 = vmax.f32 %v2042, %v2146
    %v2179 = vmax.f32 %v2043, %v2145
    %v2180 = vmax.f32 %v2044, %v2146
    %v2181 = vpack.c.bf16 %v2148, %v2147
    %v2182 = vpack.c.bf16 %v2150, %v2149
    %v2183 = vpack.c.bf16 %v2152, %v2151
    %v2184 = vpack.c.bf16 %v2154, %v2153
    %v2185 = vpack.c.bf16 %v2156, %v2155
    %v2186 = vpack.c.bf16 %v2158, %v2157
    %v2187 = vpack.c.bf16 %v2160, %v2159
    %v2188 = vpack.c.bf16 %v2162, %v2161
    %v2189 = vpack.c.bf16 %v2164, %v2163
    %v2190 = vpack.c.bf16 %v2166, %v2165
    %v2191 = vpack.c.bf16 %v2168, %v2167
    %v2192 = vpack.c.bf16 %v2170, %v2169
    %v2193 = vpack.c.bf16 %v2172, %v2171
    %v2194 = vpack.c.bf16 %v2174, %v2173
    %v2195 = vpack.c.bf16 %v2176, %v2175
    %v2196 = vpack.c.bf16 %v2178, %v2177
    %v2197 = vpack.c.bf16 %v2180, %v2179
    %v2198 = vld [vmem:[#allocation10] sm:$0xf]
    %v2199 = vld [vmem:[#allocation10 + $0x4] sm:$0xf]
    %v2200 = vld [vmem:[#allocation10 + $0x8] sm:$0xf]
    %v2201 = vld [vmem:[#allocation10 + $0xc] sm:$0xf]
    %v2202 = vld [vmem:[#allocation10 + $0x10] sm:$0xf]
    %v2203 = vld [vmem:[#allocation10 + $0x14] sm:$0xf]
    %v2204 = vld [vmem:[#allocation10 + $0x18] sm:$0xf]
    %v2205 = vld [vmem:[#allocation10 + $0x1c] sm:$0xf]
    %v2206 = vld [vmem:[#allocation10 + $0x20] sm:$0xf]
    %v2207 = vld [vmem:[#allocation10 + $0x24] sm:$0xf]
    %v2208 = vld [vmem:[#allocation10 + $0x28] sm:$0xf]
    %v2209 = vld [vmem:[#allocation10 + $0x2c] sm:$0xf]
    %v2210 = vld [vmem:[#allocation10 + $0x30] sm:$0xf]
    %v2211 = vld [vmem:[#allocation10 + $0x34] sm:$0xf]
    %v2212 = vld [vmem:[#allocation10 + $0x38] sm:$0xf]
    %v2213 = vld [vmem:[#allocation10 + $0x3c] sm:$0xf]
    %v2230 = vunpack.c.l.b16 %v2198
    %v2231 = vunpack.c.l.b16 %v2199
    %v2232 = vunpack.c.l.b16 %v2200
    %v2233 = vunpack.c.l.b16 %v2201
    %v2234 = vunpack.c.l.b16 %v2202
    %v2235 = vunpack.c.l.b16 %v2203
    %v2236 = vunpack.c.l.b16 %v2204
    %v2237 = vunpack.c.l.b16 %v2205
    %v2238 = vunpack.c.l.b16 %v2206
    %v2239 = vunpack.c.l.b16 %v2207
    %v2240 = vunpack.c.l.b16 %v2208
    %v2241 = vunpack.c.l.b16 %v2209
    %v2242 = vunpack.c.l.b16 %v2210
    %v2243 = vunpack.c.l.b16 %v2211
    %v2244 = vunpack.c.l.b16 %v2212
    %v2245 = vunpack.c.l.b16 %v2213
    %v2246 = vpack.c.b16 %v2231, %v2230
    %v2247 = vpack.c.b16 %v2233, %v2232
    %v2248 = vpack.c.b16 %v2235, %v2234
    %v2249 = vpack.c.b16 %v2237, %v2236
    %v2250 = vpack.c.b16 %v2239, %v2238
    %v2251 = vpack.c.b16 %v2241, %v2240
    %v2252 = vpack.c.b16 %v2243, %v2242
    %v2253 = vpack.c.b16 %v2245, %v2244
    %2262 = vmatprep.subr.bf16.mxu0 0
    %2263 = vmatpush1.bf16.msra.mxu0 %v2246
    %2264 = vmatprep.subr.bf16.mxu0 0
    %2265 = vmatpush1.bf16.msra.mxu0 %v2247
    %2266 = vmatprep.subr.bf16.mxu0 0
    %2267 = vmatpush1.bf16.msra.mxu0 %v2248
    %2268 = vmatprep.subr.bf16.mxu0 0
    %2269 = vmatpush1.bf16.msra.mxu0 %v2249
    %2270 = vmatprep.subr.bf16.mxu0 0
    %2271 = vmatpush1.bf16.msra.mxu0 %v2250
    %2272 = vmatprep.subr.bf16.mxu0 0
    %2273 = vmatpush1.bf16.msra.mxu0 %v2251
    %2274 = vmatprep.subr.bf16.mxu0 0
    %2275 = vmatpush1.bf16.msra.mxu0 %v2252
    %2276 = vmatprep.subr.bf16.mxu0 0
    %2277 = vmatpush1.bf16.msra.mxu0 %v2253
    %2278 = vmatprep.subr.bf16.mxu0 0
    %2279 = vmatpush1.bf16.msra.mxu0 0
    %2280 = vmatprep.subr.bf16.mxu0 0
    %2281 = vmatpush1.bf16.msra.mxu0 0
    %2282 = vmatprep.subr.bf16.mxu0 0
    %2283 = vmatpush1.bf16.msra.mxu0 0
    %2284 = vmatprep.subr.bf16.mxu0 0
    %2285 = vmatpush1.bf16.msra.mxu0 0
    %2286 = vmatprep.subr.bf16.mxu0 0
    %2287 = vmatpush1.bf16.msra.mxu0 0
    %2288 = vmatprep.subr.bf16.mxu0 0
    %2289 = vmatpush1.bf16.msra.mxu0 0
    %2290 = vmatprep.subr.bf16.mxu0 0
    %2291 = vmatpush1.bf16.msra.mxu0 0
    %2292 = vmatprep.subr.bf16.mxu0 0
    %2293 = vmatpush1.bf16.msra.mxu0 0
    %2294 = vmatprep.mubr.bf16.mxu0 0
    %2295 = vmatmul.mubr.bf16.gmra.mrb[0].mxu0 %v2181
    %v2296 = vpop.f32.mrb[0].mxu0
    %v2297 = vadd.f32 0.0, %v2296
    %v2298 = vpop.f32.mrb[0].mxu0
    %v2299 = vpop.f32.mrb[0].mxu0
    %v2300 = vadd.f32 0.0, %v2299
    %v2301 = vpop.f32.mrb[0].mxu0
    %2302 = vmatprep.mubr.bf16.mxu0 0
    %2303 = vmatmul.mubr.bf16.gmra.mrb[0].mxu0 %v2182
    %v2304 = vpop.f32.mrb[0].mxu0
    %v2305 = vadd.f32 0.0, %v2304
    %v2306 = vpop.f32.mrb[0].mxu0
    %v2307 = vpop.f32.mrb[0].mxu0
    %v2308 = vadd.f32 0.0, %v2307
    %v2309 = vpop.f32.mrb[0].mxu0
    %2310 = vmatprep.mubr.bf16.mxu0 0
    %2311 = vmatmul.mubr.bf16.gmra.mrb[0].mxu0 %v2183
    %v2312 = vpop.f32.mrb[0].mxu0
    %v2313 = vadd.f32 0.0, %v2312
    %v2314 = vpop.f32.mrb[0].mxu0
    %v2315 = vpop.f32.mrb[0].mxu0
    %v2316 = vadd.f32 0.0, %v2315
    %v2317 = vpop.f32.mrb[0].mxu0
    %2318 = vmatprep.mubr.bf16.mxu0 0
    %2319 = vmatmul.mubr.bf16.gmra.mrb[0].mxu0 %v2184
    %v2320 = vpop.f32.mrb[0].mxu0
    %v2321 = vadd.f32 0.0, %v2320
    %v2322 = vpop.f32.mrb[0].mxu0
    %v2323 = vpop.f32.mrb[0].mxu0
    %v2324 = vadd.f32 0.0, %v2323
    %v2325 = vpop.f32.mrb[0].mxu0
    %2326 = vmatprep.mubr.bf16.mxu0 0
    %2327 = vmatmul.mubr.bf16.gmra.mrb[0].mxu0 %v2185
    %v2328 = vpop.f32.mrb[0].mxu0
    %v2329 = vadd.f32 0.0, %v2328
    %v2330 = vpop.f32.mrb[0].mxu0
    %v2331 = vpop.f32.mrb[0].mxu0
    %v2332 = vadd.f32 0.0, %v2331
    %v2333 = vpop.f32.mrb[0].mxu0
    %2334 = vmatprep.mubr.bf16.mxu0 0
    %2335 = vmatmul.mubr.bf16.gmra.mrb[0].mxu0 %v2186
    %v2336 = vpop.f32.mrb[0].mxu0
    %v2337 = vadd.f32 0.0, %v2336
    %v2338 = vpop.f32.mrb[0].mxu0
    %v2339 = vpop.f32.mrb[0].mxu0
    %v2340 = vadd.f32 0.0, %v2339
    %v2341 = vpop.f32.mrb[0].mxu0
    %2342 = vmatprep.mubr.bf16.mxu0 0
    %2343 = vmatmul.mubr.bf16.gmra.mrb[0].mxu0 %v2187
    %v2344 = vpop.f32.mrb[0].mxu0
    %v2345 = vadd.f32 0.0, %v2344
    %v2346 = vpop.f32.mrb[0].mxu0
    %v2347 = vpop.f32.mrb[0].mxu0
    %v2348 = vadd.f32 0.0, %v2347
    %v2349 = vpop.f32.mrb[0].mxu0
    %2350 = vmatprep.mubr.bf16.mxu0 0
    %2351 = vmatmul.mubr.bf16.gmra.mrb[0].mxu0 %v2188
    %v2352 = vpop.f32.mrb[0].mxu0
    %v2353 = vadd.f32 0.0, %v2352
    %v2354 = vpop.f32.mrb[0].mxu0
    %v2355 = vpop.f32.mrb[0].mxu0
    %v2356 = vadd.f32 0.0, %v2355
    %v2357 = vpop.f32.mrb[0].mxu0
    %2358 = vmatprep.mubr.bf16.mxu0 0
    %2359 = vmatmul.mubr.bf16.gmra.mrb[0].mxu0 %v2189
    %v2360 = vpop.f32.mrb[0].mxu0
    %v2361 = vadd.f32 0.0, %v2360
    %v2362 = vpop.f32.mrb[0].mxu0
    %v2363 = vpop.f32.mrb[0].mxu0
    %v2364 = vadd.f32 0.0, %v2363
    %v2365 = vpop.f32.mrb[0].mxu0
    %2366 = vmatprep.mubr.bf16.mxu0 0
    %2367 = vmatmul.mubr.bf16.gmra.mrb[0].mxu0 %v2190
    %v2368 = vpop.f32.mrb[0].mxu0
    %v2369 = vadd.f32 0.0, %v2368
    %v2370 = vpop.f32.mrb[0].mxu0
    %v2371 = vpop.f32.mrb[0].mxu0
    %v2372 = vadd.f32 0.0, %v2371
    %v2373 = vpop.f32.mrb[0].mxu0
    %2374 = vmatprep.mubr.bf16.mxu0 0
    %2375 = vmatmul.mubr.bf16.gmra.mrb[0].mxu0 %v2191
    %v2376 = vpop.f32.mrb[0].mxu0
    %v2377 = vadd.f32 0.0, %v2376
    %v2378 = vpop.f32.mrb[0].mxu0
    %v2379 = vpop.f32.mrb[0].mxu0
    %v2380 = vadd.f32 0.0, %v2379
    %v2381 = vpop.f32.mrb[0].mxu0
    %2382 = vmatprep.mubr.bf16.mxu0 0
    %2383 = vmatmul.mubr.bf16.gmra.mrb[0].mxu0 %v2192
    %v2384 = vpop.f32.mrb[0].mxu0
    %v2385 = vadd.f32 0.0, %v2384
    %v2386 = vpop.f32.mrb[0].mxu0
    %v2387 = vpop.f32.mrb[0].mxu0
    %v2388 = vadd.f32 0.0, %v2387
    %v2389 = vpop.f32.mrb[0].mxu0
    %2390 = vmatprep.mubr.bf16.mxu0 0
    %2391 = vmatmul.mubr.bf16.gmra.mrb[0].mxu0 %v2193
    %v2392 = vpop.f32.mrb[0].mxu0
    %v2393 = vadd.f32 0.0, %v2392
    %v2394 = vpop.f32.mrb[0].mxu0
    %v2395 = vpop.f32.mrb[0].mxu0
    %v2396 = vadd.f32 0.0, %v2395
    %v2397 = vpop.f32.mrb[0].mxu0
    %2398 = vmatprep.mubr.bf16.mxu0 0
    %2399 = vmatmul.mubr.bf16.gmra.mrb[0].mxu0 %v2194
    %v2400 = vpop.f32.mrb[0].mxu0
    %v2401 = vadd.f32 0.0, %v2400
    %v2402 = vpop.f32.mrb[0].mxu0
    %v2403 = vpop.f32.mrb[0].mxu0
    %v2404 = vadd.f32 0.0, %v2403
    %v2405 = vpop.f32.mrb[0].mxu0
    %2406 = vmatprep.mubr.bf16.mxu0 0
    %2407 = vmatmul.mubr.bf16.gmra.mrb[0].mxu0 %v2195
    %v2408 = vpop.f32.mrb[0].mxu0
    %v2409 = vadd.f32 0.0, %v2408
    %v2410 = vpop.f32.mrb[0].mxu0
    %v2411 = vpop.f32.mrb[0].mxu0
    %v2412 = vadd.f32 0.0, %v2411
    %v2413 = vpop.f32.mrb[0].mxu0
    %2414 = vmatprep.mubr.bf16.mxu0 0
    %2415 = vmatmul.mubr.bf16.gmra.mrb[0].mxu0 %v2196
    %v2416 = vpop.f32.mrb[0].mxu0
    %v2417 = vadd.f32 0.0, %v2416
    %v2418 = vpop.f32.mrb[0].mxu0
    %v2419 = vpop.f32.mrb[0].mxu0
    %v2420 = vadd.f32 0.0, %v2419
    %v2421 = vpop.f32.mrb[0].mxu0
    %2422 = vmatprep.mubr.bf16.mxu0 0
    %2423 = vmatmul.mubr.bf16.gmra.mrb[0].mxu0 %v2197
    %v2424 = vpop.f32.mrb[0].mxu0
    %v2425 = vadd.f32 0.0, %v2424
    %v2426 = vpop.f32.mrb[0].mxu0
    %v2427 = vpop.f32.mrb[0].mxu0
    %v2428 = vadd.f32 0.0, %v2427
    %v2429 = vpop.f32.mrb[0].mxu0
    %2430 = vdwg.mxu0
    %2431 = vst [vmem:[#allocation11] sm:$0xff] %v2297
    %2432 = vst [vmem:[#allocation11 + $0x8] sm:$0xff] %v2300
    %2433 = vst [vmem:[#allocation11 + $0x10] sm:$0xff] %v2305
    %2434 = vst [vmem:[#allocation11 + $0x18] sm:$0xff] %v2308
    %2435 = vst [vmem:[#allocation11 + $0x20] sm:$0xff] %v2313
    %2436 = vst [vmem:[#allocation11 + $0x28] sm:$0xff] %v2316
    %2437 = vst [vmem:[#allocation11 + $0x30] sm:$0xff] %v2321
    %2438 = vst [vmem:[#allocation11 + $0x38] sm:$0xff] %v2324
    %2439 = vst [vmem:[#allocation11 + $0x40] sm:$0xff] %v2329
    %2440 = vst [vmem:[#allocation11 + $0x48] sm:$0xff] %v2332
    %2441 = vst [vmem:[#allocation11 + $0x50] sm:$0xff] %v2337
    %2442 = vst [vmem:[#allocation11 + $0x58] sm:$0xff] %v2340
    %2443 = vst [vmem:[#allocation11 + $0x60] sm:$0xff] %v2345
    %2444 = vst [vmem:[#allocation11 + $0x68] sm:$0xff] %v2348
    %2445 = vst [vmem:[#allocation11 + $0x70] sm:$0xff] %v2353
    %2446 = vst [vmem:[#allocation11 + $0x78] sm:$0xff] %v2356
    %2447 = vst [vmem:[#allocation11 + $0x80] sm:$0xff] %v2361
    %2448 = vst [vmem:[#allocation11 + $0x88] sm:$0xff] %v2364
    %2449 = vst [vmem:[#allocation11 + $0x90] sm:$0xff] %v2369
    %2450 = vst [vmem:[#allocation11 + $0x98] sm:$0xff] %v2372
    %2451 = vst [vmem:[#allocation11 + $0xa0] sm:$0xff] %v2377
    %2452 = vst [vmem:[#allocation11 + $0xa8] sm:$0xff] %v2380
    %2453 = vst [vmem:[#allocation11 + $0xb0] sm:$0xff] %v2385
    %2454 = vst [vmem:[#allocation11 + $0xb8] sm:$0xff] %v2388
    %2455 = vst [vmem:[#allocation11 + $0xc0] sm:$0xff] %v2393
    %2456 = vst [vmem:[#allocation11 + $0xc8] sm:$0xff] %v2396
    %2457 = vst [vmem:[#allocation11 + $0xd0] sm:$0xff] %v2401
    %2458 = vst [vmem:[#allocation11 + $0xd8] sm:$0xff] %v2404
    %2459 = vst [vmem:[#allocation11 + $0xe0] sm:$0xff] %v2409
    %2460 = vst [vmem:[#allocation11 + $0xe8] sm:$0xff] %v2412
    %2461 = vst [vmem:[#allocation11 + $0xf0] sm:$0xff] %v2417
    %2462 = vst [vmem:[#allocation11 + $0xf8] sm:$0xff] %v2420
    %2463 = vst [vmem:[#allocation11 + $0x100] sm:$0xff] %v2425
    %2464 = vst [vmem:[#allocation11 + $0x108] sm:$0xff] %v2428
    // Predicated region
    $region42: #{tpu_custom_call.1} parent=1 // pred_check
      _
    $region43: #{tpu_custom_call.1} parent=1 // pred_check_branch
      %2466 = sbr.rel (0) target = $region45
    $region44: #{tpu_custom_call.1} parent=1 // pred_region
      %s2468 = ssub.s32 4352, 4352
      %2469 = vsyncadd [#allocation4], %s2468
      %s2470 = sshll.u32 [#allocation11], 4
      %s2471 = int_to_ptr.vmem [resolvable:$true] %s2470
      %2476 = dma.vmem_to_hbm [thread:$0]  %s2471, 4352, %s5, [#allocation4], 128, 128, 8
    $region45: #{tpu_custom_call.1} parent=1 // pred_fallthru
      _
    // Predicated region
    $region46: #{tpu_custom_call.1} parent=1 // pred_check
      _
    $region47: #{tpu_custom_call.1} parent=1 // pred_check_branch
      %2478 = sbr.rel (0) target = $region49
    $region48: #{tpu_custom_call.1} parent=1 // pred_region
      %2479 = dma.done [#allocation4], 4352
    $region49: #{tpu_custom_call.1} parent=1 // pred_fallthru
      _
    %2480 = vsyncpa [#allocation3], 1
    %2481 = vsyncpa [#allocation6], 1
    %2482 = vsyncpa [#allocation9], 1
    %2483 = vsyncpa [#allocation4], 1

</llo_original>
